<compile_context>
chip_gen: v5e
topology: v5e:2x2
jax: 0.10.0
libtpu: 0.0.40
codegen_flags: <defaults>
</compile_context>

<pallas_src>
import functools

import jax
import jax.numpy as jnp
from jax import lax
from jax.experimental import pallas as pl
from jax.experimental.pallas import tpu as pltpu


def _round_up(v, m):
    return (v + m - 1) // m * m


# ----------------------------- Pallas kernel -----------------------------

def _convlstm_kernel(w_ih_ref, w_hh_ref, b_ref, x_ref, hx_ref, cx_ref,
                     hy_ref, cy_ref, imcol_ref, *,
                     cin, kh, kw, w_img, ts, halo):
    """One (batch, spatial-tile) block of the ConvLSTM cell update.

    w_ih_ref : (4Hc, Kih_pad) f32   tap-major (di,dj,cin) 3x3 weight (resident)
    w_hh_ref : (4Hc, Hc)      mm-dt 1x1 recurrent weight (resident)
    b_ref    : (4Hc, 1)       f32   bias_ih + bias_hh (resident)
    x_ref    : (Cin, Sx_pad)  f32   whole linearised image of this batch element,
                                    resident across the spatial grid axis
    hx_ref   : (Hc, TS) mm-dt ; cx_ref : (Hc, TS) f32
    hy_ref   : (Hc, TS) mm-dt ; cy_ref : (Hc, TS) f32
    imcol_ref: (Kih_pad, TS) f32 scratch for the in-kernel im2col
    """
    si = pl.program_id(1)
    t0 = pl.multiple_of(si * ts, 128)
    # One lane-aligned load of the tile + halo; the 9 taps below are *static*
    # lane-shifted slices of this value (no HBM im2col, no unaligned DMA).
    xh = x_ref[:, pl.ds(t0, ts + halo)]                       # (Cin, TS+HALO)

    k_ih = cin * kh * kw
    for k in range(kh * kw):                                  # unrolled, static
        di, dj = divmod(k, kw)
        off = di * w_img + dj                                 # constant flat shift
        imcol_ref[k * cin:(k + 1) * cin, :] = xh[:, off:off + ts]
    k_ih_pad = imcol_ref.shape[0]
    if k_ih_pad > k_ih:
        # Zero the sublane-padding rows (their weight columns are zero, but the
        # scratch is uninitialised VMEM and 0*NaN would poison the matmul).
        imcol_ref[k_ih:k_ih_pad, :] = jnp.zeros((k_ih_pad - k_ih, ts), jnp.float32)

    # gates = conv_ih(x) + conv_hh(hx) + bias : one MXU matmul per conv.
    gates = jnp.dot(w_ih_ref[...], imcol_ref[...],
                    preferred_element_type=jnp.float32)
    gates = gates + jnp.dot(w_hh_ref[...], hx_ref[...],
                            preferred_element_type=jnp.float32)
    gates = gates + b_ref[...]                                # (4Hc,1) lane broadcast

    hc = cx_ref.shape[0]

    def sig(v):   # sigmoid(v) = 0.5*(1 + tanh(v/2)): 1 EUP pass, not exp + recip
        return 0.5 * jnp.tanh(0.5 * v) + 0.5

    # Gate split = sublane-row slices (Hc multiple of 8 -> no relayout).
    ingate     = sig(gates[0 * hc:1 * hc, :])
    forgetgate = sig(gates[1 * hc:2 * hc, :])
    cellgate   = jnp.tanh(gates[2 * hc:3 * hc, :])
    outgate    = sig(gates[3 * hc:4 * hc, :])

    cy = forgetgate * cx_ref[...] + ingate * cellgate
    hy = outgate * jnp.tanh(cy)
    cy_ref[...] = cy                                          # f32 recurrence state
    hy_ref[...] = hy.astype(hy_ref.dtype)                     # bf16 store by default


# ----------------------------- JAX glue -----------------------------

def prepare_convlstm_params(w_ih, b_ih, w_hh, b_hh, *, matmul_dtype=jnp.bfloat16):
    """Weight/bias prep.  In a multi-timestep RNN call this ONCE outside the
    step loop (review item: hoist w_fused/bias construction and casts)."""
    g4, cin, kh, kw = w_ih.shape
    hc = w_hh.shape[1]
    k_ih = cin * kh * kw
    k_ih_pad = _round_up(k_ih, 8)
    # Tap-major (di, dj, cin) column order to match the in-kernel im2col rows;
    # zero-pad K to a sublane multiple so the scratch has no odd remainder.
    w_ih_r = jnp.transpose(w_ih, (0, 2, 3, 1)).reshape(g4, k_ih).astype(jnp.float32)
    w_ih_r = jnp.pad(w_ih_r, ((0, 0), (0, k_ih_pad - k_ih)))
    w_hh_f = w_hh.reshape(g4, hc).astype(matmul_dtype)
    bias = (b_ih + b_hh).reshape(g4, 1).astype(jnp.float32)
    return w_ih_r, w_hh_f, bias


def conv_lstm_cell(x, hx, cx, w_ih, b_ih, w_hh, b_hh, *,
                   tile_s=2048, matmul_dtype=jnp.bfloat16):
    """ConvLSTMCell forward.  NCHW in / NCHW out.

    x : (N, Cin, H, W)
    hx, cx : (N, Hc, Ho, Wo)  with Ho = H - kh + 1, Wo = W - kw + 1 (valid conv)
    w_ih : (4Hc, Cin, kh, kw), b_ih : (4Hc,)
    w_hh : (4Hc, Hc, 1, 1),    b_hh : (4Hc,)
    returns (hy, cy): hy in `matmul_dtype` (it feeds the next-step bf16 matmul),
    cy in f32.  Pass matmul_dtype=jnp.float32 for a torch-exact f32 path.
    Hc should be a multiple of 8 (free sublane gate split); other values are
    correct but trigger relayouts.
    """
    n, cin, h, w = x.shape
    g4, _, kh, kw = w_ih.shape
    hc = w_hh.shape[1]
    ho, wo = h - kh + 1, w - kw + 1
    assert hx.shape == (n, hc, ho, wo) and cx.shape == (n, hc, ho, wo)

    w_ih_r, w_hh_f, bias = prepare_convlstm_params(
        w_ih, b_ih, w_hh, b_hh, matmul_dtype=matmul_dtype)
    k_ih_pad = w_ih_r.shape[1]

    # ---- "same-grid" linearised spatial layout -----------------------------
    # States/outputs live on an (Ho, W) grid flattened to S = Ho*W, so every
    # 3x3 tap is the constant flat shift di*W + dj of x itself.  Columns
    # c >= Wo are computed-then-discarded garbage (bounded, never NaN).
    s_lin = ho * w

    ts = tile_s if s_lin >= tile_s else s_lin
    ts = _round_up(max(ts, 128), 128)
    if n == 1 and s_lin > 128:
        # Keep >= 2 grid programs so v7x's two TensorCores both get work.
        ts = min(ts, _round_up((s_lin + 1) // 2, 128))
    s_pad = _round_up(s_lin, ts)
    halo = _round_up((kh - 1) * w + (kw - 1), 128)
    s_x_pad = s_pad + halo                                    # multiple of 128

    # x: free reshape + zero tail; stays f32 (only Cin rows -> negligible HBM).
    x_lin = jnp.pad(x.reshape(n, cin, h * w).astype(jnp.float32),
                    ((0, 0), (0, 0), (0, s_x_pad - h * w)))

    # hx/cx: cheap pad Wo->W, flatten, pad flat axis to the tile multiple.
    def to_lin(a, dtype):
        a = jnp.pad(a, ((0, 0), (0, 0), (0, 0), (0, w - wo)))
        a = a.reshape(n, hc, s_lin)
        return jnp.pad(a, ((0, 0), (0, 0), (0, s_pad - s_lin))).astype(dtype)

    hx_lin = to_lin(hx, matmul_dtype)
    cx_lin = to_lin(cx, jnp.float32)

    grid = (n, s_pad // ts)

    kernel = functools.partial(_convlstm_kernel, cin=cin, kh=kh, kw=kw,
                               w_img=w, ts=ts, halo=halo)

    mm_bytes = jnp.dtype(matmul_dtype).itemsize
    est_vmem = (2 * ts * hc * 2 * (mm_bytes + 4)              # dbl-buffered hx/cx/hy/cy
                + k_ih_pad * ts * 4                           # im2col scratch
                + 2 * g4 * ts * 4                             # gates temporaries
                + 2 * (cin * s_x_pad * 4                      # resident x (per batch)
                       + g4 * (k_ih_pad * 4 + hc * mm_bytes + 4)))
    vmem_limit = int(min(max(est_vmem + (4 << 20), 32 << 20), 64 << 20))

    hy_lin, cy_lin = pl.pallas_call(
        kernel,
        out_shape=(jax.ShapeDtypeStruct((n, hc, s_pad), matmul_dtype),
                   jax.ShapeDtypeStruct((n, hc, s_pad), jnp.float32)),
        grid_spec=pltpu.PrefetchScalarGridSpec(
            num_scalar_prefetch=0,
            grid=grid,
            in_specs=[
                pl.BlockSpec((g4, k_ih_pad), lambda b, si: (0, 0)),          # resident
                pl.BlockSpec((g4, hc),       lambda b, si: (0, 0)),          # resident
                pl.BlockSpec((g4, 1),        lambda b, si: (0, 0)),          # resident
                pl.BlockSpec((None, cin, s_x_pad), lambda b, si: (b, 0, 0)), # per-batch x
                pl.BlockSpec((None, hc, ts), lambda b, si: (b, 0, si)),
                pl.BlockSpec((None, hc, ts), lambda b, si: (b, 0, si)),
            ],
            out_specs=(
                pl.BlockSpec((None, hc, ts), lambda b, si: (b, 0, si)),
                pl.BlockSpec((None, hc, ts), lambda b, si: (b, 0, si)),
            ),
            scratch_shapes=[pltpu.VMEM((k_ih_pad, ts), jnp.float32)],
        ),
        compiler_params=pltpu.CompilerParams(
            dimension_semantics=("parallel", "parallel"),
            vmem_limit_bytes=vmem_limit),
    )(w_ih_r, w_hh_f, bias, x_lin, hx_lin, cx_lin)

    # TODO(synk): in a multi-timestep RNN keep hy/cy in this (N, Hc, S_pad)
    # linearised layout across steps (hy feeds straight back as hx_lin, cy as
    # cx_lin, optionally with input_output_aliases); the padded tail holds
    # bounded garbage (not zeros) and must keep being ignored.  The slice /
    # reshape below is the one-step exit back to NCHW.
    hy = hy_lin[:, :, :s_lin].reshape(n, hc, ho, w)[:, :, :, :wo]
    cy = cy_lin[:, :, :s_lin].reshape(n, hc, ho, w)[:, :, :, :wo]
    return hy, cy


# ----------------------------- reference (pure JAX) -----------------------------

def conv_lstm_cell_ref(x, hx, cx, w_ih, b_ih, w_hh, b_hh, hh_dtype=jnp.float32):
    """lax.conv reference.  conv_ih is always f32 (the kernel keeps the x path
    in f32); conv_hh operands are cast to hh_dtype (= the kernel's matmul
    dtype); accumulation and the LSTM elementwise update stay f32."""
    dn = lax.conv_dimension_numbers(x.shape, w_ih.shape, ("NCHW", "OIHW", "NCHW"))
    g_ih = lax.conv_general_dilated(x, w_ih, (1, 1), "VALID",
                                    dimension_numbers=dn,
                                    preferred_element_type=jnp.float32)
    hd, wh = hx.astype(hh_dtype), w_hh.astype(hh_dtype)
    dn2 = lax.conv_dimension_numbers(hd.shape, wh.shape, ("NCHW", "OIHW", "NCHW"))
    g_hh = lax.conv_general_dilated(hd, wh, (1, 1), "VALID",
                                    dimension_numbers=dn2,
                                    preferred_element_type=jnp.float32)
    gates = g_ih + g_hh + (b_ih + b_hh)[None, :, None, None]
    hc = hx.shape[1]
    i, f, g, o = (gates[:, k * hc:(k + 1) * hc] for k in range(4))
    i, f, g, o = jax.nn.sigmoid(i), jax.nn.sigmoid(f), jnp.tanh(g), jax.nn.sigmoid(o)
    cy = f * cx + i * g
    hy = o * jnp.tanh(cy)
    return hy, cy


# ----------------------------- main -----------------------------

if __name__ == "__main__":
    # Module config (PyTorch defaults): kernel_size=3, stride=1, padding=0,
    # dilation=1, hidden_kernel_size=1, bias=True.
    N, CIN, H, W = 2, 4, 16, 16
    HC = 32                            # hidden_channels
    KH = KW = 3
    HO, WO = H - KH + 1, W - KW + 1    # 14, 14 (valid conv)
    G = 4 * HC

    key = jax.random.PRNGKey(0)
    ks = jax.random.split(key, 7)

    def uinit(k, shape, fan_in):
        bound = 1.0 / jnp.sqrt(fan_in)
        return jax.random.uniform(k, shape, jnp.float32, -bound, bound)

    w_ih = uinit(ks[0], (G, CIN, KH, KW), CIN * KH * KW)
    b_ih = uinit(ks[1], (G,), CIN * KH * KW)
    w_hh = uinit(ks[2], (G, HC, 1, 1), HC)
    b_hh = uinit(ks[3], (G,), HC)

    x  = jax.random.normal(ks[4], (N, CIN, H, W), jnp.float32)
    hx = jax.random.normal(ks[5], (N, HC, HO, WO), jnp.float32)
    cx = jax.random.normal(ks[6], (N, HC, HO, WO), jnp.float32)

    cell = jax.jit(conv_lstm_cell, static_argnames=("tile_s", "matmul_dtype"))

    # 1) Exact-precision path (f32 everywhere) vs f32 reference.
    hy32, cy32 = cell(x, hx, cx, w_ih, b_ih, w_hh, b_hh,
                      matmul_dtype=jnp.float32)
    jax.block_until_ready((hy32, cy32))
    hy_r32, cy_r32 = conv_lstm_cell_ref(x, hx, cx, w_ih, b_ih, w_hh, b_hh,
                                        hh_dtype=jnp.float32)
    assert jnp.allclose(hy32, hy_r32, atol=1e-4, rtol=1e-4)
    assert jnp.allclose(cy32, cy_r32, atol=1e-4, rtol=1e-4)

    # 2) Performance path (bf16 hx matmul + bf16 hy store, f32 accumulation
    #    and f32 cy) vs a reference run at matched operand precision.
    hybf, cybf = cell(x, hx, cx, w_ih, b_ih, w_hh, b_hh,
                      matmul_dtype=jnp.bfloat16)
    jax.block_until_ready((hybf, cybf))
    hy_rbf, cy_rbf = conv_lstm_cell_ref(x, hx, cx, w_ih, b_ih, w_hh, b_hh,
                                        hh_dtype=jnp.bfloat16)
    assert jnp.allclose(hybf.astype(jnp.float32), hy_rbf, atol=5e-3, rtol=5e-3)
    assert jnp.allclose(cybf, cy_rbf, atol=5e-3, rtol=5e-3)

    print("KERNEL_OK")
</pallas_src>

<mosaic_0001>
module attributes {stable_mosaic.version = 11 : i64} {
  func.func @_convlstm_kernel(%arg0: i32, %arg1: i32, %arg2: memref<128x40xf32, #tpu.memory_space<vmem>>, %arg3: memref<128x32xf32, #tpu.memory_space<vmem>>, %arg4: memref<128x1xf32, #tpu.memory_space<vmem>>, %arg5: memref<1x4x384xf32, #tpu.memory_space<vmem>>, %arg6: memref<1x32x256xf32, #tpu.memory_space<vmem>>, %arg7: memref<1x32x256xf32, #tpu.memory_space<vmem>>, %arg8: memref<1x32x256xf32, #tpu.memory_space<vmem>>, %arg9: memref<1x32x256xf32, #tpu.memory_space<vmem>>, %arg10: memref<40x256xf32, #tpu.memory_space<vmem>>) attributes {dimension_semantics = [#tpu.dimension_semantics<parallel>, #tpu.dimension_semantics<parallel>], iteration_bounds = array<i64: 2, 1>, scalar_prefetch = 0 : i64, scratch_operands = 1 : i64, tpu.core_type = #tpu.core_type<tc>, window_params = [{pipeline_mode = #tpu.pipeline_mode<synchronous>, transform_indices = @transform_0, window_bounds = array<i64: 128, 40>}, {pipeline_mode = #tpu.pipeline_mode<synchronous>, transform_indices = @transform_1, window_bounds = array<i64: 128, 32>}, {pipeline_mode = #tpu.pipeline_mode<synchronous>, transform_indices = @transform_2, window_bounds = array<i64: 128, 1>}, {transform_indices = @transform_3, window_bounds = array<i64: 1, 4, 384>}, {transform_indices = @transform_4, window_bounds = array<i64: 1, 32, 256>}, {transform_indices = @transform_5, window_bounds = array<i64: 1, 32, 256>}, {transform_indices = @transform_6, window_bounds = array<i64: 1, 32, 256>}, {transform_indices = @transform_7, window_bounds = array<i64: 1, 32, 256>}]} {
    %c256_i32 = arith.constant 256 : i32
    %0 = arith.muli %arg1, %c256_i32 : i32
    %1 = tpu.assume_multiple %0, 128 : i32
    %c0 = arith.constant 0 : index
    %c0_0 = arith.constant 0 : index
    %2 = arith.index_cast %1 : i32 to index
    %3 = vector.load %arg5[%c0, %c0_0, %2] : memref<1x4x384xf32, #tpu.memory_space<vmem>>, vector<1x4x384xf32>
    %4 = vector.shape_cast %3 : vector<1x4x384xf32> to vector<4x384xf32>
    %5 = vector.extract_strided_slice %4 {offsets = [0, 0], sizes = [4, 256], strides = [1, 1]} : vector<4x384xf32> to vector<4x256xf32>
    %c0_1 = arith.constant 0 : index
    %c0_2 = arith.constant 0 : index
    %6 = vector.load %arg10[%c0_1, %c0_2] : memref<40x256xf32, #tpu.memory_space<vmem>>, vector<4x256xf32>
    tpu.vector_store %arg10[%c0_1, %c0_2], %5 {strides = array<i32>} : memref<40x256xf32, #tpu.memory_space<vmem>>, vector<4x256xf32>,
    %7 = vector.extract_strided_slice %4 {offsets = [0, 1], sizes = [4, 256], strides = [1, 1]} : vector<4x384xf32> to vector<4x256xf32>
    %c4 = arith.constant 4 : index
    %c0_3 = arith.constant 0 : index
    %8 = vector.load %arg10[%c4, %c0_3] : memref<40x256xf32, #tpu.memory_space<vmem>>, vector<4x256xf32>
    tpu.vector_store %arg10[%c4, %c0_3], %7 {strides = array<i32>} : memref<40x256xf32, #tpu.memory_space<vmem>>, vector<4x256xf32>,
    %9 = vector.extract_strided_slice %4 {offsets = [0, 2], sizes = [4, 256], strides = [1, 1]} : vector<4x384xf32> to vector<4x256xf32>
    %c8 = arith.constant 8 : index
    %c0_4 = arith.constant 0 : index
    %10 = vector.load %arg10[%c8, %c0_4] : memref<40x256xf32, #tpu.memory_space<vmem>>, vector<4x256xf32>
    tpu.vector_store %arg10[%c8, %c0_4], %9 {strides = array<i32>} : memref<40x256xf32, #tpu.memory_space<vmem>>, vector<4x256xf32>,
    %11 = vector.extract_strided_slice %4 {offsets = [0, 16], sizes = [4, 256], strides = [1, 1]} : vector<4x384xf32> to vector<4x256xf32>
    %c12 = arith.constant 12 : index
    %c0_5 = arith.constant 0 : index
    %12 = vector.load %arg10[%c12, %c0_5] : memref<40x256xf32, #tpu.memory_space<vmem>>, vector<4x256xf32>
    tpu.vector_store %arg10[%c12, %c0_5], %11 {strides = array<i32>} : memref<40x256xf32, #tpu.memory_space<vmem>>, vector<4x256xf32>,
    %13 = vector.extract_strided_slice %4 {offsets = [0, 17], sizes = [4, 256], strides = [1, 1]} : vector<4x384xf32> to vector<4x256xf32>
    %c16 = arith.constant 16 : index
    %c0_6 = arith.constant 0 : index
    %14 = vector.load %arg10[%c16, %c0_6] : memref<40x256xf32, #tpu.memory_space<vmem>>, vector<4x256xf32>
    tpu.vector_store %arg10[%c16, %c0_6], %13 {strides = array<i32>} : memref<40x256xf32, #tpu.memory_space<vmem>>, vector<4x256xf32>,
    %15 = vector.extract_strided_slice %4 {offsets = [0, 18], sizes = [4, 256], strides = [1, 1]} : vector<4x384xf32> to vector<4x256xf32>
    %c20 = arith.constant 20 : index
    %c0_7 = arith.constant 0 : index
    %16 = vector.load %arg10[%c20, %c0_7] : memref<40x256xf32, #tpu.memory_space<vmem>>, vector<4x256xf32>
    tpu.vector_store %arg10[%c20, %c0_7], %15 {strides = array<i32>} : memref<40x256xf32, #tpu.memory_space<vmem>>, vector<4x256xf32>,
    %17 = vector.extract_strided_slice %4 {offsets = [0, 32], sizes = [4, 256], strides = [1, 1]} : vector<4x384xf32> to vector<4x256xf32>
    %c24 = arith.constant 24 : index
    %c0_8 = arith.constant 0 : index
    %18 = vector.load %arg10[%c24, %c0_8] : memref<40x256xf32, #tpu.memory_space<vmem>>, vector<4x256xf32>
    tpu.vector_store %arg10[%c24, %c0_8], %17 {strides = array<i32>} : memref<40x256xf32, #tpu.memory_space<vmem>>, vector<4x256xf32>,
    %19 = vector.extract_strided_slice %4 {offsets = [0, 33], sizes = [4, 256], strides = [1, 1]} : vector<4x384xf32> to vector<4x256xf32>
    %c28 = arith.constant 28 : index
    %c0_9 = arith.constant 0 : index
    %20 = vector.load %arg10[%c28, %c0_9] : memref<40x256xf32, #tpu.memory_space<vmem>>, vector<4x256xf32>
    tpu.vector_store %arg10[%c28, %c0_9], %19 {strides = array<i32>} : memref<40x256xf32, #tpu.memory_space<vmem>>, vector<4x256xf32>,
    %21 = vector.extract_strided_slice %4 {offsets = [0, 34], sizes = [4, 256], strides = [1, 1]} : vector<4x384xf32> to vector<4x256xf32>
    %c32 = arith.constant 32 : index
    %c0_10 = arith.constant 0 : index
    %22 = vector.load %arg10[%c32, %c0_10] : memref<40x256xf32, #tpu.memory_space<vmem>>, vector<4x256xf32>
    tpu.vector_store %arg10[%c32, %c0_10], %21 {strides = array<i32>} : memref<40x256xf32, #tpu.memory_space<vmem>>, vector<4x256xf32>,
    %cst = arith.constant 0.000000e+00 : f32
    %23 = vector.broadcast %cst : f32 to vector<4x256xf32>
    %c36 = arith.constant 36 : index
    %c0_11 = arith.constant 0 : index
    %24 = vector.load %arg10[%c36, %c0_11] : memref<40x256xf32, #tpu.memory_space<vmem>>, vector<4x256xf32>
    tpu.vector_store %arg10[%c36, %c0_11], %23 {strides = array<i32>} : memref<40x256xf32, #tpu.memory_space<vmem>>, vector<4x256xf32>,
    %c0_12 = arith.constant 0 : index
    %c0_13 = arith.constant 0 : index
    %25 = vector.load %arg2[%c0_12, %c0_13] : memref<128x40xf32, #tpu.memory_space<vmem>>, vector<128x40xf32>
    %c0_14 = arith.constant 0 : index
    %c0_15 = arith.constant 0 : index
    %26 = vector.load %arg10[%c0_14, %c0_15] : memref<40x256xf32, #tpu.memory_space<vmem>>, vector<40x256xf32>
    %cst_16 = arith.constant dense<0.000000e+00> : vector<128x256xf32>
    %27 = tpu.matmul %25, %26, %cst_16 {dimension_numbers = #tpu.dot_dimension_numbers<[1], [0], [0], [1], [0, 0, 1, 1], [], []>} : vector<128x40xf32>, vector<40x256xf32>, vector<128x256xf32> -> vector<128x256xf32>
    %c0_17 = arith.constant 0 : index
    %c0_18 = arith.constant 0 : index
    %28 = vector.load %arg3[%c0_17, %c0_18] : memref<128x32xf32, #tpu.memory_space<vmem>>, vector<128x32xf32>
    %c0_19 = arith.constant 0 : index
    %c0_20 = arith.constant 0 : index
    %c0_21 = arith.constant 0 : index
    %29 = vector.load %arg6[%c0_19, %c0_20, %c0_21] : memref<1x32x256xf32, #tpu.memory_space<vmem>>, vector<1x32x256xf32>
    %30 = vector.shape_cast %29 : vector<1x32x256xf32> to vector<32x256xf32>
    %cst_22 = arith.constant dense<0.000000e+00> : vector<128x256xf32>
    %31 = tpu.matmul %28, %30, %cst_22 {dimension_numbers = #tpu.dot_dimension_numbers<[1], [0], [0], [1], [0, 0, 1, 1], [], []>} : vector<128x32xf32>, vector<32x256xf32>, vector<128x256xf32> -> vector<128x256xf32>
    %32 = arith.addf %27, %31 : vector<128x256xf32>
    %c0_23 = arith.constant 0 : index
    %c0_24 = arith.constant 0 : index
    %33 = vector.load %arg4[%c0_23, %c0_24] : memref<128x1xf32, #tpu.memory_space<vmem>>, vector<128x1xf32>
    %34 = vector.broadcast %33 : vector<128x1xf32> to vector<128x256xf32>
    %35 = arith.addf %32, %34 : vector<128x256xf32>
    %36 = vector.extract_strided_slice %35 {offsets = [0, 0], sizes = [32, 256], strides = [1, 1]} : vector<128x256xf32> to vector<32x256xf32>
    %cst_25 = arith.constant 5.000000e-01 : f32
    %37 = vector.broadcast %cst_25 : f32 to vector<32x256xf32>
    %38 = arith.mulf %37, %36 : vector<32x256xf32>
    %39 = math.tanh %38 : vector<32x256xf32>
    %cst_26 = arith.constant 5.000000e-01 : f32
    %40 = vector.broadcast %cst_26 : f32 to vector<32x256xf32>
    %41 = arith.mulf %40, %39 : vector<32x256xf32>
    %cst_27 = arith.constant 5.000000e-01 : f32
    %42 = vector.broadcast %cst_27 : f32 to vector<32x256xf32>
    %43 = arith.addf %41, %42 : vector<32x256xf32>
    %44 = vector.extract_strided_slice %35 {offsets = [32, 0], sizes = [32, 256], strides = [1, 1]} : vector<128x256xf32> to vector<32x256xf32>
    %cst_28 = arith.constant 5.000000e-01 : f32
    %45 = vector.broadcast %cst_28 : f32 to vector<32x256xf32>
    %46 = arith.mulf %45, %44 : vector<32x256xf32>
    %47 = math.tanh %46 : vector<32x256xf32>
    %cst_29 = arith.constant 5.000000e-01 : f32
    %48 = vector.broadcast %cst_29 : f32 to vector<32x256xf32>
    %49 = arith.mulf %48, %47 : vector<32x256xf32>
    %cst_30 = arith.constant 5.000000e-01 : f32
    %50 = vector.broadcast %cst_30 : f32 to vector<32x256xf32>
    %51 = arith.addf %49, %50 : vector<32x256xf32>
    %52 = vector.extract_strided_slice %35 {offsets = [64, 0], sizes = [32, 256], strides = [1, 1]} : vector<128x256xf32> to vector<32x256xf32>
    %53 = math.tanh %52 : vector<32x256xf32>
    %54 = vector.extract_strided_slice %35 {offsets = [96, 0], sizes = [32, 256], strides = [1, 1]} : vector<128x256xf32> to vector<32x256xf32>
    %cst_31 = arith.constant 5.000000e-01 : f32
    %55 = vector.broadcast %cst_31 : f32 to vector<32x256xf32>
    %56 = arith.mulf %55, %54 : vector<32x256xf32>
    %57 = math.tanh %56 : vector<32x256xf32>
    %cst_32 = arith.constant 5.000000e-01 : f32
    %58 = vector.broadcast %cst_32 : f32 to vector<32x256xf32>
    %59 = arith.mulf %58, %57 : vector<32x256xf32>
    %cst_33 = arith.constant 5.000000e-01 : f32
    %60 = vector.broadcast %cst_33 : f32 to vector<32x256xf32>
    %61 = arith.addf %59, %60 : vector<32x256xf32>
    %c0_34 = arith.constant 0 : index
    %c0_35 = arith.constant 0 : index
    %c0_36 = arith.constant 0 : index
    %62 = vector.load %arg7[%c0_34, %c0_35, %c0_36] : memref<1x32x256xf32, #tpu.memory_space<vmem>>, vector<1x32x256xf32>
    %63 = vector.shape_cast %62 : vector<1x32x256xf32> to vector<32x256xf32>
    %64 = arith.mulf %51, %63 : vector<32x256xf32>
    %65 = arith.mulf %43, %53 : vector<32x256xf32>
    %66 = arith.addf %64, %65 : vector<32x256xf32>
    %67 = math.tanh %66 : vector<32x256xf32>
    %68 = arith.mulf %61, %67 : vector<32x256xf32>
    %c0_37 = arith.constant 0 : index
    %c0_38 = arith.constant 0 : index
    %c0_39 = arith.constant 0 : index
    %69 = vector.load %arg9[%c0_37, %c0_38, %c0_39] : memref<1x32x256xf32, #tpu.memory_space<vmem>>, vector<1x32x256xf32>
    %70 = vector.shape_cast %69 : vector<1x32x256xf32> to vector<32x256xf32>
    %71 = vector.shape_cast %66 : vector<32x256xf32> to vector<1x32x256xf32>
    tpu.vector_store %arg9[%c0_37, %c0_38, %c0_39], %71 {strides = array<i32>} : memref<1x32x256xf32, #tpu.memory_space<vmem>>, vector<1x32x256xf32>,
    %c0_40 = arith.constant 0 : index
    %c0_41 = arith.constant 0 : index
    %c0_42 = arith.constant 0 : index
    %72 = vector.load %arg8[%c0_40, %c0_41, %c0_42] : memref<1x32x256xf32, #tpu.memory_space<vmem>>, vector<1x32x256xf32>
    %73 = vector.shape_cast %72 : vector<1x32x256xf32> to vector<32x256xf32>
    %74 = vector.shape_cast %68 : vector<32x256xf32> to vector<1x32x256xf32>
    tpu.vector_store %arg8[%c0_40, %c0_41, %c0_42], %74 {strides = array<i32>} : memref<1x32x256xf32, #tpu.memory_space<vmem>>, vector<1x32x256xf32>,
    return
  }
  func.func @transform_0(%arg0: i32, %arg1: i32) -> (i32, i32) {
    %c0_i32 = arith.constant 0 : i32
    %c0_i32_0 = arith.constant 0 : i32
    %c0_i32_1 = arith.constant 0 : i32
    return %c0_i32, %c0_i32_0 : i32, i32
  }
  func.func @transform_1(%arg0: i32, %arg1: i32) -> (i32, i32) {
    %c0_i32 = arith.constant 0 : i32
    %c0_i32_0 = arith.constant 0 : i32
    %c0_i32_1 = arith.constant 0 : i32
    return %c0_i32, %c0_i32_0 : i32, i32
  }
  func.func @transform_2(%arg0: i32, %arg1: i32) -> (i32, i32) {
    %c0_i32 = arith.constant 0 : i32
    %c0_i32_0 = arith.constant 0 : i32
    %c0_i32_1 = arith.constant 0 : i32
    return %c0_i32, %c0_i32_0 : i32, i32
  }
  func.func @transform_3(%arg0: i32, %arg1: i32) -> (i32, i32, i32) {
    %c0_i32 = arith.constant 0 : i32
    %c0_i32_0 = arith.constant 0 : i32
    %c0_i32_1 = arith.constant 0 : i32
    return %arg0, %c0_i32, %c0_i32_0 : i32, i32, i32
  }
  func.func @transform_4(%arg0: i32, %arg1: i32) -> (i32, i32, i32) {
    %c0_i32 = arith.constant 0 : i32
    %c0_i32_0 = arith.constant 0 : i32
    return %arg0, %c0_i32, %arg1 : i32, i32, i32
  }
  func.func @transform_5(%arg0: i32, %arg1: i32) -> (i32, i32, i32) {
    %c0_i32 = arith.constant 0 : i32
    %c0_i32_0 = arith.constant 0 : i32
    return %arg0, %c0_i32, %arg1 : i32, i32, i32
  }
  func.func @transform_6(%arg0: i32, %arg1: i32) -> (i32, i32, i32) {
    %c0_i32 = arith.constant 0 : i32
    %c0_i32_0 = arith.constant 0 : i32
    return %arg0, %c0_i32, %arg1 : i32, i32, i32
  }
  func.func @transform_7(%arg0: i32, %arg1: i32) -> (i32, i32, i32) {
    %c0_i32 = arith.constant 0 : i32
    %c0_i32_0 = arith.constant 0 : i32
    return %arg0, %c0_i32, %arg1 : i32, i32, i32
  }
}

</mosaic_0001>

<llo_original>
// kernel: conv_lstm_cell.1
$region0: #{conv_lstm_cell.1}
  #allocation0 [shape = 'u32[]', space=smem, size = 0x4, offset = 0x4, fixed_abs, tag = 'smem constant byte address 0x4 - core index']
  #allocation1 [shape = 'u32[72,128]{1,0:T(1,128)}', space=vmem, size = 0x9000, scoped, tag = 'internal scratch']
  #allocation2 [shape = 'f32[40,256]{1,0:T(8,128)}', space=vmem, size = 0xa000, scoped, tag = 'scratch operand']
  %s0 = inlined_call_operand.vmem [shape: f32[128,40], index: 0, kind: input, shape index: {}]
  %s1 = inlined_call_operand.vmem [shape: f32[128,32], index: 1, kind: input, shape index: {}]
  %s2 = inlined_call_operand.vmem [shape: f32[128,1], index: 2, kind: input, shape index: {}]
  %s3 = inlined_call_operand.vmem [shape: f32[2,4,384], index: 3, kind: input, shape index: {}]
  %s4 = inlined_call_operand.vmem [shape: f32[2,32,256], index: 4, kind: input, shape index: {}]
  %s5 = inlined_call_operand.vmem [shape: f32[2,32,256], index: 5, kind: input, shape index: {}]
  %s6 = inlined_call_operand.vmem [shape: f32[2,32,256], index: 6, kind: output, shape index: {0}]
  %s7 = inlined_call_operand.vmem [shape: f32[2,32,256], index: 7, kind: output, shape index: {1}]
  %8 = xla_tuple %s6, %s7
  %s9 = sld [smem:[#allocation0]]
  $region65: #{conv_lstm_cell.1} parent=0
    _
  %s11 = ssub.s32 1, %s9
  %s12 = scalar_select 0, %s11, %s9
  loop: start=0, step=1, limit=4
  $region2: #{conv_lstm_cell.1} parent=0 // loop_pre_header
    _
  $region3: #{conv_lstm_cell.1} parent=0 // loop_header
    %s14 = sphi 0, %s18
    %p15 = scmp.ge.s32.totalorder %s14, 4
    %s21 = sphi 0, %s33
    %s22 = sphi 0, %s29
    %s23 = sphi 0, %s21
    %s24 = sphi 0, %s22
    %s25 = sphi 0, %s23
    %s26 = sphi 0, %s24
    %s34 = sphi 0, %s34
    %s36 = sphi 0, %s34
    %s37 = sphi 0, %s36
    %s51 = sphi 0, %s37
    %s55 = sphi 0, %s55
    %s57 = sphi 0, %s55
    %s58 = sphi 0, %s57
    %s72 = sphi 0, %s58
    %s76 = sphi 0, %s76
    %s78 = sphi 0, %s76
    %s79 = sphi 0, %s78
    %s93 = sphi 0, %s79
    %s99 = sphi 0, %s101
    %s102 = sphi 0, %s99
    %s103 = sphi 0, %s102
    %s119 = sphi 0, %s103
    %s127 = sphi 0, %s129
    %s130 = sphi 0, %s127
    %s131 = sphi 0, %s130
    %s147 = sphi 0, %s131
    %s155 = sphi 0, %s157
    %s158 = sphi 0, %s155
    %s159 = sphi 0, %s158
    %s175 = sphi 0, %s159
    %s183 = sphi 0, %s185
    %s186 = sphi 0, %s183
    %s187 = sphi 0, %s186
    %s203 = sphi 0, %s187
    %s211 = sphi 0, %s213
    %s214 = sphi 0, %s211
    %s215 = sphi 0, %s214
    %s231 = sphi 0, %s215
  $region4: #{conv_lstm_cell.1} parent=0 // loop_header_branch
    %17 = sbr.rel (%p15) target = $region8
  $region5: #{conv_lstm_cell.1} parent=0 // loop_body
    %s19 = ssub.s32 %s14, 1
    %s20 = ssub.s32 %s14, 2
    %s27 = sadd.s32 1, %s22
    %p28 = scmp.ge.s32.totalorder %s27, 1
    %s29 = scalar_select %p28, 0, %s27
    %s30 = sadd.s32 1, %s21
    %s31 = scalar_select %p28, %s30, %s21
    %p32 = scmp.ge.s32.totalorder %s31, 2
    %s33 = scalar_select %p32, 0, %s31
    %s35 = sadd.s32 %s34, 1
    %p38 = scmp.eq.s32.totalorder %s14, 1
    %p39 = scmp.ne.s32.totalorder %s34, %s36
    %p40 = scmp.eq.s32.totalorder %s14, 0
    %p41 = por %p39, %p40
    %p42 = scmp.ne.s32.totalorder %s34, %s36
    %p43 = scmp.eq.s32.totalorder %s19, 1
    %p44 = por %p42, %p43
    %p45 = scmp.ne.s32.totalorder %s36, %s37
    %p46 = scmp.eq.s32.totalorder %s19, 0
    %p47 = por %p45, %p46
    %p48 = scmp.ne.s32.totalorder %s36, %s37
    %p49 = scmp.eq.s32.totalorder %s20, 1
    %p50 = por %p48, %p49
    %p52 = scmp.ne.s32.totalorder %s37, %s51
    %p53 = scmp.eq.s32.totalorder %s20, 0
    %p54 = por %p52, %p53
    %s56 = sadd.s32 %s55, 1
    %p59 = scmp.eq.s32.totalorder %s14, 1
    %p60 = scmp.ne.s32.totalorder %s55, %s57
    %p61 = scmp.eq.s32.totalorder %s14, 0
    %p62 = por %p60, %p61
    %p63 = scmp.ne.s32.totalorder %s55, %s57
    %p64 = scmp.eq.s32.totalorder %s19, 1
    %p65 = por %p63, %p64
    %p66 = scmp.ne.s32.totalorder %s57, %s58
    %p67 = scmp.eq.s32.totalorder %s19, 0
    %p68 = por %p66, %p67
    %p69 = scmp.ne.s32.totalorder %s57, %s58
    %p70 = scmp.eq.s32.totalorder %s20, 1
    %p71 = por %p69, %p70
    %p73 = scmp.ne.s32.totalorder %s58, %s72
    %p74 = scmp.eq.s32.totalorder %s20, 0
    %p75 = por %p73, %p74
    %s77 = sadd.s32 %s76, 1
    %p80 = scmp.eq.s32.totalorder %s14, 1
    %p81 = scmp.ne.s32.totalorder %s76, %s78
    %p82 = scmp.eq.s32.totalorder %s14, 0
    %p83 = por %p81, %p82
    %p84 = scmp.ne.s32.totalorder %s76, %s78
    %p85 = scmp.eq.s32.totalorder %s19, 1
    %p86 = por %p84, %p85
    %p87 = scmp.ne.s32.totalorder %s78, %s79
    %p88 = scmp.eq.s32.totalorder %s19, 0
    %p89 = por %p87, %p88
    %p90 = scmp.ne.s32.totalorder %s78, %s79
    %p91 = scmp.eq.s32.totalorder %s20, 1
    %p92 = por %p90, %p91
    %p94 = scmp.ne.s32.totalorder %s79, %s93
    %p95 = scmp.eq.s32.totalorder %s20, 0
    %p96 = por %p94, %p95
    %s97 = ssub.s32 %s21, %s33
    %p98 = scmp.eq.s32.totalorder %s97, 0
    %s100 = sadd.s32 %s99, 1
    %s101 = scalar_select %p98, %s99, %s100
    %p104 = pneg %p98
    %p105 = scmp.eq.s32.totalorder %s14, 1
    %p106 = por %p104, %p105
    %p107 = scmp.ne.s32.totalorder %s99, %s102
    %p108 = scmp.eq.s32.totalorder %s14, 0
    %p109 = por %p107, %p108
    %p110 = scmp.ne.s32.totalorder %s99, %s102
    %p111 = scmp.eq.s32.totalorder %s19, 1
    %p112 = por %p110, %p111
    %p113 = scmp.ne.s32.totalorder %s102, %s103
    %p114 = scmp.eq.s32.totalorder %s19, 0
    %p115 = por %p113, %p114
    %p116 = scmp.ne.s32.totalorder %s102, %s103
    %p117 = scmp.eq.s32.totalorder %s20, 1
    %p118 = por %p116, %p117
    %p120 = scmp.ne.s32.totalorder %s103, %s119
    %p121 = scmp.eq.s32.totalorder %s20, 0
    %p122 = por %p120, %p121
    %s123 = ssub.s32 %s21, %s33
    %s124 = ssub.s32 %s22, %s29
    %s125 = sor.u32 %s123, %s124
    %p126 = scmp.eq.s32.totalorder %s125, 0
    %s128 = sadd.s32 %s127, 1
    %s129 = scalar_select %p126, %s127, %s128
    %p132 = pneg %p126
    %p133 = scmp.eq.s32.totalorder %s14, 1
    %p134 = por %p132, %p133
    %p135 = scmp.ne.s32.totalorder %s127, %s130
    %p136 = scmp.eq.s32.totalorder %s14, 0
    %p137 = por %p135, %p136
    %p138 = scmp.ne.s32.totalorder %s127, %s130
    %p139 = scmp.eq.s32.totalorder %s19, 1
    %p140 = por %p138, %p139
    %p141 = scmp.ne.s32.totalorder %s130, %s131
    %p142 = scmp.eq.s32.totalorder %s19, 0
    %p143 = por %p141, %p142
    %p144 = scmp.ne.s32.totalorder %s130, %s131
    %p145 = scmp.eq.s32.totalorder %s20, 1
    %p146 = por %p144, %p145
    %p148 = scmp.ne.s32.totalorder %s131, %s147
    %p149 = scmp.eq.s32.totalorder %s20, 0
    %p150 = por %p148, %p149
    %s151 = ssub.s32 %s21, %s33
    %s152 = ssub.s32 %s22, %s29
    %s153 = sor.u32 %s151, %s152
    %p154 = scmp.eq.s32.totalorder %s153, 0
    %s156 = sadd.s32 %s155, 1
    %s157 = scalar_select %p154, %s155, %s156
    %p160 = pneg %p154
    %p161 = scmp.eq.s32.totalorder %s14, 1
    %p162 = por %p160, %p161
    %p163 = scmp.ne.s32.totalorder %s155, %s158
    %p164 = scmp.eq.s32.totalorder %s14, 0
    %p165 = por %p163, %p164
    %p166 = scmp.ne.s32.totalorder %s155, %s158
    %p167 = scmp.eq.s32.totalorder %s19, 1
    %p168 = por %p166, %p167
    %p169 = scmp.ne.s32.totalorder %s158, %s159
    %p170 = scmp.eq.s32.totalorder %s19, 0
    %p171 = por %p169, %p170
    %p172 = scmp.ne.s32.totalorder %s158, %s159
    %p173 = scmp.eq.s32.totalorder %s20, 1
    %p174 = por %p172, %p173
    %p176 = scmp.ne.s32.totalorder %s159, %s175
    %p177 = scmp.eq.s32.totalorder %s20, 0
    %p178 = por %p176, %p177
    %s179 = ssub.s32 %s21, %s33
    %s180 = ssub.s32 %s22, %s29
    %s181 = sor.u32 %s179, %s180
    %p182 = scmp.eq.s32.totalorder %s181, 0
    %s184 = sadd.s32 %s183, 1
    %s185 = scalar_select %p182, %s183, %s184
    %p188 = pneg %p182
    %p189 = scmp.eq.s32.totalorder %s14, 1
    %p190 = por %p188, %p189
    %p191 = scmp.ne.s32.totalorder %s183, %s186
    %p192 = scmp.eq.s32.totalorder %s14, 0
    %p193 = por %p191, %p192
    %p194 = scmp.ne.s32.totalorder %s183, %s186
    %p195 = scmp.eq.s32.totalorder %s19, 1
    %p196 = por %p194, %p195
    %p197 = scmp.ne.s32.totalorder %s186, %s187
    %p198 = scmp.eq.s32.totalorder %s19, 0
    %p199 = por %p197, %p198
    %p200 = scmp.ne.s32.totalorder %s186, %s187
    %p201 = scmp.eq.s32.totalorder %s20, 1
    %p202 = por %p200, %p201
    %p204 = scmp.ne.s32.totalorder %s187, %s203
    %p205 = scmp.eq.s32.totalorder %s20, 0
    %p206 = por %p204, %p205
    %s207 = ssub.s32 %s21, %s33
    %s208 = ssub.s32 %s22, %s29
    %s209 = sor.u32 %s207, %s208
    %p210 = scmp.eq.s32.totalorder %s209, 0
    %s212 = sadd.s32 %s211, 1
    %s213 = scalar_select %p210, %s211, %s212
    %p216 = pneg %p210
    %p217 = scmp.eq.s32.totalorder %s14, 1
    %p218 = por %p216, %p217
    %p219 = scmp.ne.s32.totalorder %s211, %s214
    %p220 = scmp.eq.s32.totalorder %s14, 0
    %p221 = por %p219, %p220
    %p222 = scmp.ne.s32.totalorder %s211, %s214
    %p223 = scmp.eq.s32.totalorder %s19, 1
    %p224 = por %p222, %p223
    %p225 = scmp.ne.s32.totalorder %s214, %s215
    %p226 = scmp.eq.s32.totalorder %s19, 0
    %p227 = por %p225, %p226
    %p228 = scmp.ne.s32.totalorder %s214, %s215
    %p229 = scmp.eq.s32.totalorder %s20, 1
    %p230 = por %p228, %p229
    %p232 = scmp.ne.s32.totalorder %s215, %s231
    %p233 = scmp.eq.s32.totalorder %s20, 0
    %p234 = por %p232, %p233
    %p235 = scmp.le.s32.totalorder 1, %s14
    %p236 = scmp.lt.s32.totalorder %s14, 3
    %p237 = pnand %p235, %p236
    %p238 = pneg %p237
    // Predicated region
    $region9: #{conv_lstm_cell.1} parent=5 // pred_check
      _
    $region10: #{conv_lstm_cell.1} parent=5 // pred_check_branch
      %240 = sbr.rel (%p237) target = $region12
    $region11: #{conv_lstm_cell.1} parent=5 // pred_region
      %s241 = ssub.s32 %s14, 1
      // Predicated region
      $region13: #{conv_lstm_cell.1} parent=11 // pred_check
        %p242 = pneg %p47
      $region14: #{conv_lstm_cell.1} parent=11 // pred_check_branch
        %244 = sbr.rel (%p242) target = $region16
      $region15: #{conv_lstm_cell.1} parent=11 // pred_region
        _
      $region16: #{conv_lstm_cell.1} parent=11 // pred_fallthru
        _
      // Predicated region
      $region17: #{conv_lstm_cell.1} parent=11 // pred_check
        %p245 = pneg %p68
      $region18: #{conv_lstm_cell.1} parent=11 // pred_check_branch
        %247 = sbr.rel (%p245) target = $region20
      $region19: #{conv_lstm_cell.1} parent=11 // pred_region
        _
      $region20: #{conv_lstm_cell.1} parent=11 // pred_fallthru
        _
      // Predicated region
      $region21: #{conv_lstm_cell.1} parent=11 // pred_check
        %p248 = pneg %p89
      $region22: #{conv_lstm_cell.1} parent=11 // pred_check_branch
        %250 = sbr.rel (%p248) target = $region24
      $region23: #{conv_lstm_cell.1} parent=11 // pred_region
        _
      $region24: #{conv_lstm_cell.1} parent=11 // pred_fallthru
        _
    $region12: #{conv_lstm_cell.1} parent=5 // pred_fallthru
      _
    %p251 = scmp.lt.s32.totalorder %s14, 2
    // Predicated region
    $region25: #{conv_lstm_cell.1} parent=5 // pred_check
      %p252 = pneg %p251
    $region26: #{conv_lstm_cell.1} parent=5 // pred_check_branch
      %254 = sbr.rel (%p252) target = $region28
    $region27: #{conv_lstm_cell.1} parent=5 // pred_region
      // Predicated region
      $region29: #{conv_lstm_cell.1} parent=27 // pred_check
        %p255 = pneg %p109
      $region30: #{conv_lstm_cell.1} parent=27 // pred_check_branch
        %257 = sbr.rel (%p255) target = $region32
      $region31: #{conv_lstm_cell.1} parent=27 // pred_region
        %p258 = scmp.lt.s32.totalorder %s21, 1
        %s259 = scalar_select %p258, %s21, 1
        %s260 = smul.addr %s259, 3
        %s261 = smul.addr %s260, 4
        %s262 = scalar_lea.vmem %s3, %s261
      $region32: #{conv_lstm_cell.1} parent=27 // pred_fallthru
        _
      // Predicated region
      $region33: #{conv_lstm_cell.1} parent=27 // pred_check
        %p263 = pneg %p137
      $region34: #{conv_lstm_cell.1} parent=27 // pred_check_branch
        %265 = sbr.rel (%p263) target = $region36
      $region35: #{conv_lstm_cell.1} parent=27 // pred_region
        %s266 = smul.u32 2, %s22
        %p267 = scmp.lt.s32.totalorder %s21, 1
        %s268 = scalar_select %p267, %s21, 1
        %p269 = scmp.lt.s32.totalorder %s266, 1
        %s270 = scalar_select %p269, %s266, 1
        %s271 = smul.addr %s268, 8
        %s272 = sadd.s32 %s270, %s271
        %s273 = smul.addr %s272, 8
        %s274 = scalar_lea.vmem %s4, %s273
        %s275 = smul.u32 2, %s22
      $region36: #{conv_lstm_cell.1} parent=27 // pred_fallthru
        _
      // Predicated region
      $region37: #{conv_lstm_cell.1} parent=27 // pred_check
        %p276 = pneg %p165
      $region38: #{conv_lstm_cell.1} parent=27 // pred_check_branch
        %278 = sbr.rel (%p276) target = $region40
      $region39: #{conv_lstm_cell.1} parent=27 // pred_region
        %s279 = smul.u32 2, %s22
        %p280 = scmp.lt.s32.totalorder %s21, 1
        %s281 = scalar_select %p280, %s21, 1
        %p282 = scmp.lt.s32.totalorder %s279, 1
        %s283 = scalar_select %p282, %s279, 1
        %s284 = smul.addr %s281, 8
        %s285 = sadd.s32 %s283, %s284
        %s286 = smul.addr %s285, 8
        %s287 = scalar_lea.vmem %s5, %s286
        %s288 = smul.u32 2, %s22
      $region40: #{conv_lstm_cell.1} parent=27 // pred_fallthru
        _
    $region28: #{conv_lstm_cell.1} parent=5 // pred_fallthru
      _
    %p289 = scmp.le.s32.totalorder 1, %s14
    %p290 = scmp.lt.s32.totalorder %s14, 3
    %p291 = pnand %p289, %p290
    %p292 = pneg %p291
    // Predicated region
    $region41: #{conv_lstm_cell.1} parent=5 // pred_check
      _
    $region42: #{conv_lstm_cell.1} parent=5 // pred_check_branch
      %294 = sbr.rel (%p291) target = $region44
    $region43: #{conv_lstm_cell.1} parent=5 // pred_region
      %s295 = ssub.s32 %s14, 1
      %p296 = pneg %p47
      %p297 = pneg %p44
      %p298 = pneg %p68
      %p299 = pneg %p65
      %p300 = pneg %p89
      %p301 = pneg %p86
      %p302 = scmp.lt.s32.totalorder %s23, 1
      %s303 = scalar_select %p302, %s23, 1
      %s304 = smul.addr %s303, 3
      %s305 = smul.addr %s304, 4
      %s306 = scalar_lea.vmem %s3, %s305
      %p307 = pneg %p115
      %p308 = pneg %p112
      %s309 = smul.u32 2, %s24
      %p310 = scmp.lt.s32.totalorder %s23, 1
      %s311 = scalar_select %p310, %s23, 1
      %p312 = scmp.lt.s32.totalorder %s309, 1
      %s313 = scalar_select %p312, %s309, 1
      %s314 = smul.addr %s311, 8
      %s315 = sadd.s32 %s313, %s314
      %s316 = smul.addr %s315, 8
      %s317 = scalar_lea.vmem %s4, %s316
      %p318 = pneg %p143
      %p319 = pneg %p140
      %s320 = smul.u32 2, %s24
      %p321 = scmp.lt.s32.totalorder %s23, 1
      %s322 = scalar_select %p321, %s23, 1
      %p323 = scmp.lt.s32.totalorder %s320, 1
      %s324 = scalar_select %p323, %s320, 1
      %s325 = smul.addr %s322, 8
      %s326 = sadd.s32 %s324, %s325
      %s327 = smul.addr %s326, 8
      %s328 = scalar_lea.vmem %s5, %s327
      %p329 = pneg %p171
      %p330 = pneg %p168
      %p331 = pneg %p199
      %p332 = pneg %p196
      %s333 = smul.u32 2, %s24
      %p334 = scmp.lt.s32.totalorder %s23, 1
      %s335 = scalar_select %p334, %s23, 1
      %p336 = scmp.lt.s32.totalorder %s333, 1
      %s337 = scalar_select %p336, %s333, 1
      %s338 = smul.addr %s335, 8
      %s339 = sadd.s32 %s337, %s338
      %s340 = smul.addr %s339, 8
      %s341 = scalar_lea.vmem %s6, %s340
      %p342 = pneg %p227
      %p343 = pneg %p224
      %s344 = smul.u32 2, %s24
      %p345 = scmp.lt.s32.totalorder %s23, 1
      %s346 = scalar_select %p345, %s23, 1
      %p347 = scmp.lt.s32.totalorder %s344, 1
      %s348 = scalar_select %p347, %s344, 1
      %s349 = smul.addr %s346, 8
      %s350 = sadd.s32 %s348, %s349
      %s351 = smul.addr %s350, 8
      %s352 = scalar_lea.vmem %s7, %s351
      %p353 = scmp.lt.s32.totalorder %s23, 1
      %s354 = scalar_select %p353, %s23, 1
      %s355 = smul.addr %s354, 3
      %s356 = smul.addr %s355, 4
      %s357 = scalar_lea.vmem %s3, %s356
      %s358 = smul.u32 2, %s24
      %p359 = scmp.lt.s32.totalorder %s23, 1
      %s360 = scalar_select %p359, %s23, 1
      %p361 = scmp.lt.s32.totalorder %s358, 1
      %s362 = scalar_select %p361, %s358, 1
      %s363 = smul.addr %s360, 8
      %s364 = sadd.s32 %s362, %s363
      %s365 = smul.addr %s364, 8
      %s366 = scalar_lea.vmem %s4, %s365
      %s367 = smul.u32 2, %s24
      %s368 = smul.u32 2, %s24
      %p369 = scmp.lt.s32.totalorder %s23, 1
      %s370 = scalar_select %p369, %s23, 1
      %p371 = scmp.lt.s32.totalorder %s368, 1
      %s372 = scalar_select %p371, %s368, 1
      %s373 = smul.addr %s370, 8
      %s374 = sadd.s32 %s372, %s373
      %s375 = smul.addr %s374, 8
      %s376 = scalar_lea.vmem %s5, %s375
      %s377 = smul.u32 2, %s24
      %s378 = smul.u32 2, %s24
      %p379 = scmp.lt.s32.totalorder %s23, 1
      %s380 = scalar_select %p379, %s23, 1
      %p381 = scmp.lt.s32.totalorder %s378, 1
      %s382 = scalar_select %p381, %s378, 1
      %s383 = smul.addr %s380, 8
      %s384 = sadd.s32 %s382, %s383
      %s385 = smul.addr %s384, 8
      %s386 = scalar_lea.vmem %s6, %s385
      %s387 = smul.u32 2, %s24
      %s388 = smul.u32 2, %s24
      %p389 = scmp.lt.s32.totalorder %s23, 1
      %s390 = scalar_select %p389, %s23, 1
      %p391 = scmp.lt.s32.totalorder %s388, 1
      %s392 = scalar_select %p391, %s388, 1
      %s393 = smul.addr %s390, 8
      %s394 = sadd.s32 %s392, %s393
      %s395 = smul.addr %s394, 8
      %s396 = scalar_lea.vmem %s7, %s395
      %s397 = smul.u32 2, %s24
      %s398 = smul.u32 %s24, 256
      %s399 = sshra.s32 %s398, 7
      %s400 = sand.u32 %s398, 127
      %s401 = smul.addr %s399, 4
      %s402 = scalar_lea.vmem %s357, %s401
      %v403 = vld [vmem:[%s402] sm:$0xff]
      %v404 = vld [vmem:[%s402 + $0x8] sm:$0xf]
      %406 = vst [vmem:[#allocation1] ss:$2 sm:$0xff] %v403
      %v407 = vld.sshfl [vmem:[#allocation1] sm:$0xff pattern:$0x75316420]
      %v408 = vld.sshfl [vmem:[#allocation1 + $0x8] sm:$0xff pattern:$0x75316420]
      %411 = vst [vmem:[#allocation2] sm:$0xf] %v407
      %412 = vst [vmem:[#allocation2 + $0x8] sm:$0xf] %v408
      %s414 = scalar_lea.vmem [#allocation1], 1
      %415 = vst [vmem:[%s414] ss:$2 sm:$0xff] %v403
      %s416 = scalar_lea.vmem [#allocation1], 17
      %417 = vst [vmem:[%s416] ss:$2 sm:$0xff] %v404
      %v418 = vld.sshfl [vmem:[#allocation1] sm:$0xff pattern:$0x75316420]
      %v419 = vld.sshfl [vmem:[#allocation1 + $0x8] sm:$0xff pattern:$0x75316420]
      %v420 = vld.sshfl [vmem:[#allocation1 + $0x10] sm:$0xff pattern:$0x75316420]
      %421 = vrot.lane.b32.xlu0 %v418, 127
      %v422 = vpop.permute.xlu0 %421
      %423 = vrot.lane.b32.xlu0 %v419, 127
      %v424 = vpop.permute.xlu0 %423
      %425 = vrot.lane.b32.xlu0 %v420, 127
      %v426 = vpop.permute.xlu0 %425
      %vm427 = vcmask 1039360
      %v428 = vsel %vm427, %v422, %v424
      %v429 = vsel %vm427, %v424, %v426
      %432 = vst [vmem:[#allocation2] sm:$0xf0] %v428
      %433 = vst [vmem:[#allocation2 + $0x8] sm:$0xf0] %v429
      %434 = vst [vmem:[#allocation1] ss:$2 sm:$0xff] %v403
      %s435 = scalar_lea.vmem [#allocation1], 16
      %436 = vst [vmem:[%s435] ss:$2 sm:$0xff] %v404
      %v437 = vld.sshfl [vmem:[#allocation1] sm:$0xff pattern:$0x75316420]
      %v438 = vld.sshfl [vmem:[#allocation1 + $0x8] sm:$0xff pattern:$0x75316420]
      %v439 = vld.sshfl [vmem:[#allocation1 + $0x10] sm:$0xff pattern:$0x75316420]
      %440 = vrot.lane.b32.xlu0 %v437, 126
      %v441 = vpop.permute.xlu0 %440
      %442 = vrot.lane.b32.xlu0 %v438, 126
      %v443 = vpop.permute.xlu0 %442
      %444 = vrot.lane.b32.xlu0 %v439, 126
      %v445 = vpop.permute.xlu0 %444
      %vm446 = vcmask 1031168
      %v447 = vsel %vm446, %v441, %v443
      %v448 = vsel %vm446, %v443, %v445
      %451 = vst [vmem:[#allocation2 + $0x10] sm:$0xf] %v447
      %452 = vst [vmem:[#allocation2 + $0x18] sm:$0xf] %v448
      %s453 = scalar_lea.vmem [#allocation1], 1
      %454 = vst [vmem:[%s453] ss:$2 sm:$0xff] %v403
      %s455 = scalar_lea.vmem [#allocation1], 17
      %456 = vst [vmem:[%s455] ss:$2 sm:$0xff] %v404
      %v457 = vld.sshfl [vmem:[#allocation1] sm:$0xff pattern:$0x75316420]
      %v458 = vld.sshfl [vmem:[#allocation1 + $0x8] sm:$0xff pattern:$0x75316420]
      %v459 = vld.sshfl [vmem:[#allocation1 + $0x10] sm:$0xff pattern:$0x75316420]
      %460 = vrot.lane.b32.xlu0 %v457, 112
      %v461 = vpop.permute.xlu0 %460
      %462 = vrot.lane.b32.xlu0 %v458, 112
      %v463 = vpop.permute.xlu0 %462
      %464 = vrot.lane.b32.xlu0 %v459, 112
      %v465 = vpop.permute.xlu0 %464
      %vm466 = vcmask 916480
      %v467 = vsel %vm466, %v461, %v463
      %v468 = vsel %vm466, %v463, %v465
      %471 = vst [vmem:[#allocation2 + $0x10] sm:$0xf0] %v467
      %472 = vst [vmem:[#allocation2 + $0x18] sm:$0xf0] %v468
      %473 = vst [vmem:[#allocation1] ss:$2 sm:$0xff] %v403
      %s474 = scalar_lea.vmem [#allocation1], 16
      %475 = vst [vmem:[%s474] ss:$2 sm:$0xff] %v404
      %v476 = vld.sshfl [vmem:[#allocation1] sm:$0xff pattern:$0x75316420]
      %v477 = vld.sshfl [vmem:[#allocation1 + $0x8] sm:$0xff pattern:$0x75316420]
      %v478 = vld.sshfl [vmem:[#allocation1 + $0x10] sm:$0xff pattern:$0x75316420]
      %479 = vrot.lane.b32.xlu0 %v476, 111
      %v480 = vpop.permute.xlu0 %479
      %481 = vrot.lane.b32.xlu0 %v477, 111
      %v482 = vpop.permute.xlu0 %481
      %483 = vrot.lane.b32.xlu0 %v478, 111
      %v484 = vpop.permute.xlu0 %483
      %vm485 = vcmask 908288
      %v486 = vsel %vm485, %v480, %v482
      %v487 = vsel %vm485, %v482, %v484
      %490 = vst [vmem:[#allocation2 + $0x20] sm:$0xf] %v486
      %491 = vst [vmem:[#allocation2 + $0x28] sm:$0xf] %v487
      %s492 = scalar_lea.vmem [#allocation1], 1
      %493 = vst [vmem:[%s492] ss:$2 sm:$0xff] %v403
      %s494 = scalar_lea.vmem [#allocation1], 17
      %495 = vst [vmem:[%s494] ss:$2 sm:$0xff] %v404
      %v496 = vld.sshfl [vmem:[#allocation1] sm:$0xff pattern:$0x75316420]
      %v497 = vld.sshfl [vmem:[#allocation1 + $0x8] sm:$0xff pattern:$0x75316420]
      %v498 = vld.sshfl [vmem:[#allocation1 + $0x10] sm:$0xff pattern:$0x75316420]
      %499 = vrot.lane.b32.xlu0 %v496, 110
      %v500 = vpop.permute.xlu0 %499
      %501 = vrot.lane.b32.xlu0 %v497, 110
      %v502 = vpop.permute.xlu0 %501
      %503 = vrot.lane.b32.xlu0 %v498, 110
      %v504 = vpop.permute.xlu0 %503
      %vm505 = vcmask 900096
      %v506 = vsel %vm505, %v500, %v502
      %v507 = vsel %vm505, %v502, %v504
      %510 = vst [vmem:[#allocation2 + $0x20] sm:$0xf0] %v506
      %511 = vst [vmem:[#allocation2 + $0x28] sm:$0xf0] %v507
      %512 = vst [vmem:[#allocation1] ss:$2 sm:$0xff] %v403
      %s513 = scalar_lea.vmem [#allocation1], 16
      %514 = vst [vmem:[%s513] ss:$2 sm:$0xff] %v404
      %v515 = vld.sshfl [vmem:[#allocation1] sm:$0xff pattern:$0x75316420]
      %v516 = vld.sshfl [vmem:[#allocation1 + $0x8] sm:$0xff pattern:$0x75316420]
      %v517 = vld.sshfl [vmem:[#allocation1 + $0x10] sm:$0xff pattern:$0x75316420]
      %518 = vrot.lane.b32.xlu0 %v515, 96
      %v519 = vpop.permute.xlu0 %518
      %520 = vrot.lane.b32.xlu0 %v516, 96
      %v521 = vpop.permute.xlu0 %520
      %522 = vrot.lane.b32.xlu0 %v517, 96
      %v523 = vpop.permute.xlu0 %522
      %vm524 = vcmask 785408
      %v525 = vsel %vm524, %v519, %v521
      %v526 = vsel %vm524, %v521, %v523
      %529 = vst [vmem:[#allocation2 + $0x30] sm:$0xf] %v525
      %530 = vst [vmem:[#allocation2 + $0x38] sm:$0xf] %v526
      %s531 = scalar_lea.vmem [#allocation1], 1
      %532 = vst [vmem:[%s531] ss:$2 sm:$0xff] %v403
      %s533 = scalar_lea.vmem [#allocation1], 17
      %534 = vst [vmem:[%s533] ss:$2 sm:$0xff] %v404
      %v535 = vld.sshfl [vmem:[#allocation1] sm:$0xff pattern:$0x75316420]
      %v536 = vld.sshfl [vmem:[#allocation1 + $0x8] sm:$0xff pattern:$0x75316420]
      %v537 = vld.sshfl [vmem:[#allocation1 + $0x10] sm:$0xff pattern:$0x75316420]
      %538 = vrot.lane.b32.xlu0 %v535, 95
      %v539 = vpop.permute.xlu0 %538
      %540 = vrot.lane.b32.xlu0 %v536, 95
      %v541 = vpop.permute.xlu0 %540
      %542 = vrot.lane.b32.xlu0 %v537, 95
      %v543 = vpop.permute.xlu0 %542
      %vm544 = vcmask 777216
      %v545 = vsel %vm544, %v539, %v541
      %v546 = vsel %vm544, %v541, %v543
      %549 = vst [vmem:[#allocation2 + $0x30] sm:$0xf0] %v545
      %550 = vst [vmem:[#allocation2 + $0x38] sm:$0xf0] %v546
      %551 = vst [vmem:[#allocation1] ss:$2 sm:$0xff] %v403
      %s552 = scalar_lea.vmem [#allocation1], 16
      %553 = vst [vmem:[%s552] ss:$2 sm:$0xff] %v404
      %v554 = vld.sshfl [vmem:[#allocation1] sm:$0xff pattern:$0x75316420]
      %v555 = vld.sshfl [vmem:[#allocation1 + $0x8] sm:$0xff pattern:$0x75316420]
      %v556 = vld.sshfl [vmem:[#allocation1 + $0x10] sm:$0xff pattern:$0x75316420]
      %557 = vrot.lane.b32.xlu0 %v554, 94
      %v558 = vpop.permute.xlu0 %557
      %559 = vrot.lane.b32.xlu0 %v555, 94
      %v560 = vpop.permute.xlu0 %559
      %561 = vrot.lane.b32.xlu0 %v556, 94
      %v562 = vpop.permute.xlu0 %561
      %vm563 = vcmask 769024
      %v564 = vsel %vm563, %v558, %v560
      %v565 = vsel %vm563, %v560, %v562
      %568 = vst [vmem:[#allocation2 + $0x40] sm:$0xf] %v564
      %569 = vst [vmem:[#allocation2 + $0x48] sm:$0xf] %v565
      %570 = vst [vmem:[#allocation2 + $0x40] sm:$0xf0] 0.0
      %571 = vst [vmem:[#allocation2 + $0x48] sm:$0xf0] 0.0
      %v572 = vld [vmem:[%s0] sm:$0xff]
      %v573 = vld [vmem:[%s0 + $0x8] sm:$0xff]
      %v574 = vld [vmem:[%s0 + $0x10] sm:$0xff]
      %v575 = vld [vmem:[%s0 + $0x18] sm:$0xff]
      %v576 = vld [vmem:[%s0 + $0x20] sm:$0xff]
      %v577 = vld [vmem:[%s0 + $0x28] sm:$0xff]
      %v578 = vld [vmem:[%s0 + $0x30] sm:$0xff]
      %v579 = vld [vmem:[%s0 + $0x38] sm:$0xff]
      %v580 = vld [vmem:[%s0 + $0x40] sm:$0xff]
      %v581 = vld [vmem:[%s0 + $0x48] sm:$0xff]
      %v582 = vld [vmem:[%s0 + $0x50] sm:$0xff]
      %v583 = vld [vmem:[%s0 + $0x58] sm:$0xff]
      %v584 = vld [vmem:[%s0 + $0x60] sm:$0xff]
      %v585 = vld [vmem:[%s0 + $0x68] sm:$0xff]
      %v586 = vld [vmem:[%s0 + $0x70] sm:$0xff]
      %v587 = vld [vmem:[%s0 + $0x78] sm:$0xff]
      %v588 = vld [vmem:[#allocation2] sm:$0xff]
      %v589 = vld [vmem:[#allocation2 + $0x8] sm:$0xff]
      %v590 = vld [vmem:[#allocation2 + $0x10] sm:$0xff]
      %v591 = vld [vmem:[#allocation2 + $0x18] sm:$0xff]
      %v592 = vld [vmem:[#allocation2 + $0x20] sm:$0xff]
      %v593 = vld [vmem:[#allocation2 + $0x28] sm:$0xff]
      %v594 = vld [vmem:[#allocation2 + $0x30] sm:$0xff]
      %v595 = vld [vmem:[#allocation2 + $0x38] sm:$0xff]
      %v596 = vld [vmem:[#allocation2 + $0x40] sm:$0xff]
      %v597 = vld [vmem:[#allocation2 + $0x48] sm:$0xff]
      %v598 = vld [vmem:[%s1] sm:$0xff]
      %v599 = vld [vmem:[%s1 + $0x8] sm:$0xff]
      %v600 = vld [vmem:[%s1 + $0x10] sm:$0xff]
      %v601 = vld [vmem:[%s1 + $0x18] sm:$0xff]
      %v602 = vld [vmem:[%s1 + $0x20] sm:$0xff]
      %v603 = vld [vmem:[%s1 + $0x28] sm:$0xff]
      %v604 = vld [vmem:[%s1 + $0x30] sm:$0xff]
      %v605 = vld [vmem:[%s1 + $0x38] sm:$0xff]
      %v606 = vld [vmem:[%s1 + $0x40] sm:$0xff]
      %v607 = vld [vmem:[%s1 + $0x48] sm:$0xff]
      %v608 = vld [vmem:[%s1 + $0x50] sm:$0xff]
      %v609 = vld [vmem:[%s1 + $0x58] sm:$0xff]
      %v610 = vld [vmem:[%s1 + $0x60] sm:$0xff]
      %v611 = vld [vmem:[%s1 + $0x68] sm:$0xff]
      %v612 = vld [vmem:[%s1 + $0x70] sm:$0xff]
      %v613 = vld [vmem:[%s1 + $0x78] sm:$0xff]
      %v614 = vld [vmem:[%s366] sm:$0xff]
      %v615 = vld [vmem:[%s366 + $0x8] sm:$0xff]
      %v616 = vld [vmem:[%s366 + $0x10] sm:$0xff]
      %v617 = vld [vmem:[%s366 + $0x18] sm:$0xff]
      %v618 = vld [vmem:[%s366 + $0x20] sm:$0xff]
      %v619 = vld [vmem:[%s366 + $0x28] sm:$0xff]
      %v620 = vld [vmem:[%s366 + $0x30] sm:$0xff]
      %v621 = vld [vmem:[%s366 + $0x38] sm:$0xff]
      %vm622 = vcmask 261120
      %v624 = vsel %vm622, %v598, 0
      %v627 = vsel %vm622, %v599, 0
      %v630 = vsel %vm622, %v600, 0
      %v633 = vsel %vm622, %v601, 0
      %v636 = vsel %vm622, %v602, 0
      %v639 = vsel %vm622, %v603, 0
      %v642 = vsel %vm622, %v604, 0
      %v645 = vsel %vm622, %v605, 0
      %v648 = vsel %vm622, %v606, 0
      %v651 = vsel %vm622, %v607, 0
      %v654 = vsel %vm622, %v608, 0
      %v657 = vsel %vm622, %v609, 0
      %v660 = vsel %vm622, %v610, 0
      %v663 = vsel %vm622, %v611, 0
      %v666 = vsel %vm622, %v612, 0
      %v669 = vsel %vm622, %v613, 0
      %671 = vmatpush.msra.mxu0 0.0
      %672 = vmatpush.msra.mxu0 0.0
      %673 = vmatpush.msra.mxu0 0.0
      %674 = vmatpush.msra.mxu0 0.0
      %675 = vmatpush.msra.mxu0 0.0
      %676 = vmatpush.msra.mxu0 0.0
      %677 = vmatpush.msra.mxu0 0.0
      %678 = vmatpush.msra.mxu0 0.0
      %679 = vmatpush.msra.mxu0 0.0
      %680 = vmatpush.msra.mxu0 0.0
      %681 = vmatpush.msra.mxu0 0.0
      %682 = vmatpush.msra.mxu0 0.0
      %683 = vmatpush.msra.mxu0 %v620
      %684 = vmatpush.msra.mxu0 %v618
      %685 = vmatpush.msra.mxu0 %v616
      %686 = vmatpush.msra.mxu0 %v614
      %687 = vmatmul.f32.gmra.mxu0 %v624
      %v688 = vpop.f32.mrf.mxu0
      %v689 = vadd.f32 0.0, %v688
      %690 = vmatmul.f32.gmra.mxu0 %v627
      %v691 = vpop.f32.mrf.mxu0
      %v692 = vadd.f32 0.0, %v691
      %693 = vmatmul.f32.gmra.mxu0 %v630
      %v694 = vpop.f32.mrf.mxu0
      %v695 = vadd.f32 0.0, %v694
      %696 = vmatmul.f32.gmra.mxu0 %v633
      %v697 = vpop.f32.mrf.mxu0
      %v698 = vadd.f32 0.0, %v697
      %699 = vmatmul.f32.gmra.mxu0 %v636
      %v700 = vpop.f32.mrf.mxu0
      %v701 = vadd.f32 0.0, %v700
      %702 = vmatmul.f32.gmra.mxu0 %v639
      %v703 = vpop.f32.mrf.mxu0
      %v704 = vadd.f32 0.0, %v703
      %705 = vmatmul.f32.gmra.mxu0 %v642
      %v706 = vpop.f32.mrf.mxu0
      %v707 = vadd.f32 0.0, %v706
      %708 = vmatmul.f32.gmra.mxu0 %v645
      %v709 = vpop.f32.mrf.mxu0
      %v710 = vadd.f32 0.0, %v709
      %711 = vmatmul.f32.gmra.mxu0 %v648
      %v712 = vpop.f32.mrf.mxu0
      %v713 = vadd.f32 0.0, %v712
      %714 = vmatmul.f32.gmra.mxu0 %v651
      %v715 = vpop.f32.mrf.mxu0
      %v716 = vadd.f32 0.0, %v715
      %717 = vmatmul.f32.gmra.mxu0 %v654
      %v718 = vpop.f32.mrf.mxu0
      %v719 = vadd.f32 0.0, %v718
      %720 = vmatmul.f32.gmra.mxu0 %v657
      %v721 = vpop.f32.mrf.mxu0
      %v722 = vadd.f32 0.0, %v721
      %723 = vmatmul.f32.gmra.mxu0 %v660
      %v724 = vpop.f32.mrf.mxu0
      %v725 = vadd.f32 0.0, %v724
      %726 = vmatmul.f32.gmra.mxu0 %v663
      %v727 = vpop.f32.mrf.mxu0
      %v728 = vadd.f32 0.0, %v727
      %729 = vmatmul.f32.gmra.mxu0 %v666
      %v730 = vpop.f32.mrf.mxu0
      %v731 = vadd.f32 0.0, %v730
      %732 = vmatmul.f32.gmra.mxu0 %v669
      %v733 = vpop.f32.mrf.mxu0
      %v734 = vadd.f32 0.0, %v733
      %735 = vdwg.mxu0
      %736 = vmatpush.msra.mxu0 0.0
      %737 = vmatpush.msra.mxu0 0.0
      %738 = vmatpush.msra.mxu0 0.0
      %739 = vmatpush.msra.mxu0 0.0
      %740 = vmatpush.msra.mxu0 0.0
      %741 = vmatpush.msra.mxu0 0.0
      %742 = vmatpush.msra.mxu0 0.0
      %743 = vmatpush.msra.mxu0 0.0
      %744 = vmatpush.msra.mxu0 0.0
      %745 = vmatpush.msra.mxu0 0.0
      %746 = vmatpush.msra.mxu0 0.0
      %747 = vmatpush.msra.mxu0 0.0
      %748 = vmatpush.msra.mxu0 %v621
      %749 = vmatpush.msra.mxu0 %v619
      %750 = vmatpush.msra.mxu0 %v617
      %751 = vmatpush.msra.mxu0 %v615
      %752 = vmatmul.f32.gmra.mxu0 %v624
      %v753 = vpop.f32.mrf.mxu0
      %v754 = vadd.f32 0.0, %v753
      %755 = vmatmul.f32.gmra.mxu0 %v627
      %v756 = vpop.f32.mrf.mxu0
      %v757 = vadd.f32 0.0, %v756
      %758 = vmatmul.f32.gmra.mxu0 %v630
      %v759 = vpop.f32.mrf.mxu0
      %v760 = vadd.f32 0.0, %v759
      %761 = vmatmul.f32.gmra.mxu0 %v633
      %v762 = vpop.f32.mrf.mxu0
      %v763 = vadd.f32 0.0, %v762
      %764 = vmatmul.f32.gmra.mxu0 %v636
      %v765 = vpop.f32.mrf.mxu0
      %v766 = vadd.f32 0.0, %v765
      %767 = vmatmul.f32.gmra.mxu0 %v639
      %v768 = vpop.f32.mrf.mxu0
      %v769 = vadd.f32 0.0, %v768
      %770 = vmatmul.f32.gmra.mxu0 %v642
      %v771 = vpop.f32.mrf.mxu0
      %v772 = vadd.f32 0.0, %v771
      %773 = vmatmul.f32.gmra.mxu0 %v645
      %v774 = vpop.f32.mrf.mxu0
      %v775 = vadd.f32 0.0, %v774
      %776 = vmatmul.f32.gmra.mxu0 %v648
      %v777 = vpop.f32.mrf.mxu0
      %v778 = vadd.f32 0.0, %v777
      %779 = vmatmul.f32.gmra.mxu0 %v651
      %v780 = vpop.f32.mrf.mxu0
      %v781 = vadd.f32 0.0, %v780
      %782 = vmatmul.f32.gmra.mxu0 %v654
      %v783 = vpop.f32.mrf.mxu0
      %v784 = vadd.f32 0.0, %v783
      %785 = vmatmul.f32.gmra.mxu0 %v657
      %v786 = vpop.f32.mrf.mxu0
      %v787 = vadd.f32 0.0, %v786
      %788 = vmatmul.f32.gmra.mxu0 %v660
      %v789 = vpop.f32.mrf.mxu0
      %v790 = vadd.f32 0.0, %v789
      %791 = vmatmul.f32.gmra.mxu0 %v663
      %v792 = vpop.f32.mrf.mxu0
      %v793 = vadd.f32 0.0, %v792
      %794 = vmatmul.f32.gmra.mxu0 %v666
      %v795 = vpop.f32.mrf.mxu0
      %v796 = vadd.f32 0.0, %v795
      %797 = vmatmul.f32.gmra.mxu0 %v669
      %v798 = vpop.f32.mrf.mxu0
      %v799 = vadd.f32 0.0, %v798
      %800 = vdwg.mxu0
      %vm801 = vcmask 326656
      %v803 = vsel %vm801, %v572, 0
      %v806 = vsel %vm801, %v573, 0
      %v809 = vsel %vm801, %v574, 0
      %v812 = vsel %vm801, %v575, 0
      %v815 = vsel %vm801, %v576, 0
      %v818 = vsel %vm801, %v577, 0
      %v821 = vsel %vm801, %v578, 0
      %v824 = vsel %vm801, %v579, 0
      %v827 = vsel %vm801, %v580, 0
      %v830 = vsel %vm801, %v581, 0
      %v833 = vsel %vm801, %v582, 0
      %v836 = vsel %vm801, %v583, 0
      %v839 = vsel %vm801, %v584, 0
      %v842 = vsel %vm801, %v585, 0
      %v845 = vsel %vm801, %v586, 0
      %v848 = vsel %vm801, %v587, 0
      %850 = vmatpush.msra.mxu0 0.0
      %851 = vmatpush.msra.mxu0 0.0
      %852 = vmatpush.msra.mxu0 0.0
      %853 = vmatpush.msra.mxu0 0.0
      %854 = vmatpush.msra.mxu0 0.0
      %855 = vmatpush.msra.mxu0 0.0
      %856 = vmatpush.msra.mxu0 0.0
      %857 = vmatpush.msra.mxu0 0.0
      %858 = vmatpush.msra.mxu0 0.0
      %859 = vmatpush.msra.mxu0 0.0
      %860 = vmatpush.msra.mxu0 0.0
      %861 = vmatpush.msra.mxu0 %v596
      %862 = vmatpush.msra.mxu0 %v594
      %863 = vmatpush.msra.mxu0 %v592
      %864 = vmatpush.msra.mxu0 %v590
      %865 = vmatpush.msra.mxu0 %v588
      %866 = vmatmul.f32.gmra.mxu0 %v803
      %v867 = vpop.f32.mrf.mxu0
      %v868 = vadd.f32 %v689, %v867
      %869 = vmatmul.f32.gmra.mxu0 %v806
      %v870 = vpop.f32.mrf.mxu0
      %v871 = vadd.f32 %v692, %v870
      %872 = vmatmul.f32.gmra.mxu0 %v809
      %v873 = vpop.f32.mrf.mxu0
      %v874 = vadd.f32 %v695, %v873
      %875 = vmatmul.f32.gmra.mxu0 %v812
      %v876 = vpop.f32.mrf.mxu0
      %v877 = vadd.f32 %v698, %v876
      %878 = vmatmul.f32.gmra.mxu0 %v815
      %v879 = vpop.f32.mrf.mxu0
      %v880 = vadd.f32 %v701, %v879
      %881 = vmatmul.f32.gmra.mxu0 %v818
      %v882 = vpop.f32.mrf.mxu0
      %v883 = vadd.f32 %v704, %v882
      %884 = vmatmul.f32.gmra.mxu0 %v821
      %v885 = vpop.f32.mrf.mxu0
      %v886 = vadd.f32 %v707, %v885
      %887 = vmatmul.f32.gmra.mxu0 %v824
      %v888 = vpop.f32.mrf.mxu0
      %v889 = vadd.f32 %v710, %v888
      %890 = vmatmul.f32.gmra.mxu0 %v827
      %v891 = vpop.f32.mrf.mxu0
      %v892 = vadd.f32 %v713, %v891
      %893 = vmatmul.f32.gmra.mxu0 %v830
      %v894 = vpop.f32.mrf.mxu0
      %v895 = vadd.f32 %v716, %v894
      %896 = vmatmul.f32.gmra.mxu0 %v833
      %v897 = vpop.f32.mrf.mxu0
      %v898 = vadd.f32 %v719, %v897
      %899 = vmatmul.f32.gmra.mxu0 %v836
      %v900 = vpop.f32.mrf.mxu0
      %v901 = vadd.f32 %v722, %v900
      %902 = vmatmul.f32.gmra.mxu0 %v839
      %v903 = vpop.f32.mrf.mxu0
      %v904 = vadd.f32 %v725, %v903
      %905 = vmatmul.f32.gmra.mxu0 %v842
      %v906 = vpop.f32.mrf.mxu0
      %v907 = vadd.f32 %v728, %v906
      %908 = vmatmul.f32.gmra.mxu0 %v845
      %v909 = vpop.f32.mrf.mxu0
      %v910 = vadd.f32 %v731, %v909
      %911 = vmatmul.f32.gmra.mxu0 %v848
      %v912 = vpop.f32.mrf.mxu0
      %v913 = vadd.f32 %v734, %v912
      %914 = vdwg.mxu0
      %915 = vmatpush.msra.mxu0 0.0
      %916 = vmatpush.msra.mxu0 0.0
      %917 = vmatpush.msra.mxu0 0.0
      %918 = vmatpush.msra.mxu0 0.0
      %919 = vmatpush.msra.mxu0 0.0
      %920 = vmatpush.msra.mxu0 0.0
      %921 = vmatpush.msra.mxu0 0.0
      %922 = vmatpush.msra.mxu0 0.0
      %923 = vmatpush.msra.mxu0 0.0
      %924 = vmatpush.msra.mxu0 0.0
      %925 = vmatpush.msra.mxu0 0.0
      %926 = vmatpush.msra.mxu0 %v597
      %927 = vmatpush.msra.mxu0 %v595
      %928 = vmatpush.msra.mxu0 %v593
      %929 = vmatpush.msra.mxu0 %v591
      %930 = vmatpush.msra.mxu0 %v589
      %931 = vmatmul.f32.gmra.mxu0 %v803
      %v932 = vpop.f32.mrf.mxu0
      %v933 = vadd.f32 %v754, %v932
      %934 = vmatmul.f32.gmra.mxu0 %v806
      %v935 = vpop.f32.mrf.mxu0
      %v936 = vadd.f32 %v757, %v935
      %937 = vmatmul.f32.gmra.mxu0 %v809
      %v938 = vpop.f32.mrf.mxu0
      %v939 = vadd.f32 %v760, %v938
      %940 = vmatmul.f32.gmra.mxu0 %v812
      %v941 = vpop.f32.mrf.mxu0
      %v942 = vadd.f32 %v763, %v941
      %943 = vmatmul.f32.gmra.mxu0 %v815
      %v944 = vpop.f32.mrf.mxu0
      %v945 = vadd.f32 %v766, %v944
      %946 = vmatmul.f32.gmra.mxu0 %v818
      %v947 = vpop.f32.mrf.mxu0
      %v948 = vadd.f32 %v769, %v947
      %949 = vmatmul.f32.gmra.mxu0 %v821
      %v950 = vpop.f32.mrf.mxu0
      %v951 = vadd.f32 %v772, %v950
      %952 = vmatmul.f32.gmra.mxu0 %v824
      %v953 = vpop.f32.mrf.mxu0
      %v954 = vadd.f32 %v775, %v953
      %955 = vmatmul.f32.gmra.mxu0 %v827
      %v956 = vpop.f32.mrf.mxu0
      %v957 = vadd.f32 %v778, %v956
      %958 = vmatmul.f32.gmra.mxu0 %v830
      %v959 = vpop.f32.mrf.mxu0
      %v960 = vadd.f32 %v781, %v959
      %961 = vmatmul.f32.gmra.mxu0 %v833
      %v962 = vpop.f32.mrf.mxu0
      %v963 = vadd.f32 %v784, %v962
      %964 = vmatmul.f32.gmra.mxu0 %v836
      %v965 = vpop.f32.mrf.mxu0
      %v966 = vadd.f32 %v787, %v965
      %967 = vmatmul.f32.gmra.mxu0 %v839
      %v968 = vpop.f32.mrf.mxu0
      %v969 = vadd.f32 %v790, %v968
      %970 = vmatmul.f32.gmra.mxu0 %v842
      %v971 = vpop.f32.mrf.mxu0
      %v972 = vadd.f32 %v793, %v971
      %973 = vmatmul.f32.gmra.mxu0 %v845
      %v974 = vpop.f32.mrf.mxu0
      %v975 = vadd.f32 %v796, %v974
      %976 = vmatmul.f32.gmra.mxu0 %v848
      %v977 = vpop.f32.mrf.mxu0
      %v978 = vadd.f32 %v799, %v977
      %979 = vdwg.mxu0
      %v980 = vld [vmem:[%s2] sm:$0xff]
      %v981 = vld [vmem:[%s2 + $0x8] sm:$0xff]
      %v982 = vld [vmem:[%s2 + $0x10] sm:$0xff]
      %v983 = vld [vmem:[%s2 + $0x18] sm:$0xff]
      %v984 = vld [vmem:[%s2 + $0x20] sm:$0xff]
      %v985 = vld [vmem:[%s2 + $0x28] sm:$0xff]
      %v986 = vld [vmem:[%s2 + $0x30] sm:$0xff]
      %v987 = vld [vmem:[%s2 + $0x38] sm:$0xff]
      %v988 = vld [vmem:[%s2 + $0x40] sm:$0xff]
      %v989 = vld [vmem:[%s2 + $0x48] sm:$0xff]
      %v990 = vld [vmem:[%s2 + $0x50] sm:$0xff]
      %v991 = vld [vmem:[%s2 + $0x58] sm:$0xff]
      %v992 = vld [vmem:[%s2 + $0x60] sm:$0xff]
      %v993 = vld [vmem:[%s2 + $0x68] sm:$0xff]
      %v994 = vld [vmem:[%s2 + $0x70] sm:$0xff]
      %v995 = vld [vmem:[%s2 + $0x78] sm:$0xff]
      %997 = vset.pattern.permute.xlu0 0
      %998 = vperm.xlu0 %997, %v980
      %v999 = vpop.permute.xlu0 %998
      %1002 = vset.pattern.permute.xlu0 0
      %1003 = vperm.xlu0 %1002, %v981
      %v1004 = vpop.permute.xlu0 %1003
      %1007 = vset.pattern.permute.xlu0 0
      %1008 = vperm.xlu0 %1007, %v982
      %v1009 = vpop.permute.xlu0 %1008
      %1012 = vset.pattern.permute.xlu0 0
      %1013 = vperm.xlu0 %1012, %v983
      %v1014 = vpop.permute.xlu0 %1013
      %1017 = vset.pattern.permute.xlu0 0
      %1018 = vperm.xlu0 %1017, %v984
      %v1019 = vpop.permute.xlu0 %1018
      %1022 = vset.pattern.permute.xlu0 0
      %1023 = vperm.xlu0 %1022, %v985
      %v1024 = vpop.permute.xlu0 %1023
      %1027 = vset.pattern.permute.xlu0 0
      %1028 = vperm.xlu0 %1027, %v986
      %v1029 = vpop.permute.xlu0 %1028
      %1032 = vset.pattern.permute.xlu0 0
      %1033 = vperm.xlu0 %1032, %v987
      %v1034 = vpop.permute.xlu0 %1033
      %1037 = vset.pattern.permute.xlu0 0
      %1038 = vperm.xlu0 %1037, %v988
      %v1039 = vpop.permute.xlu0 %1038
      %1042 = vset.pattern.permute.xlu0 0
      %1043 = vperm.xlu0 %1042, %v989
      %v1044 = vpop.permute.xlu0 %1043
      %1047 = vset.pattern.permute.xlu0 0
      %1048 = vperm.xlu0 %1047, %v990
      %v1049 = vpop.permute.xlu0 %1048
      %1052 = vset.pattern.permute.xlu0 0
      %1053 = vperm.xlu0 %1052, %v991
      %v1054 = vpop.permute.xlu0 %1053
      %1057 = vset.pattern.permute.xlu0 0
      %1058 = vperm.xlu0 %1057, %v992
      %v1059 = vpop.permute.xlu0 %1058
      %1062 = vset.pattern.permute.xlu0 0
      %1063 = vperm.xlu0 %1062, %v993
      %v1064 = vpop.permute.xlu0 %1063
      %1067 = vset.pattern.permute.xlu0 0
      %1068 = vperm.xlu0 %1067, %v994
      %v1069 = vpop.permute.xlu0 %1068
      %1072 = vset.pattern.permute.xlu0 0
      %1073 = vperm.xlu0 %1072, %v995
      %v1074 = vpop.permute.xlu0 %1073
      %v1076 = vadd.f32 %v868, %v999
      %v1077 = vadd.f32 %v933, %v999
      %v1078 = vadd.f32 %v871, %v1004
      %v1079 = vadd.f32 %v936, %v1004
      %v1080 = vadd.f32 %v874, %v1009
      %v1081 = vadd.f32 %v939, %v1009
      %v1082 = vadd.f32 %v877, %v1014
      %v1083 = vadd.f32 %v942, %v1014
      %v1084 = vadd.f32 %v880, %v1019
      %v1085 = vadd.f32 %v945, %v1019
      %v1086 = vadd.f32 %v883, %v1024
      %v1087 = vadd.f32 %v948, %v1024
      %v1088 = vadd.f32 %v886, %v1029
      %v1089 = vadd.f32 %v951, %v1029
      %v1090 = vadd.f32 %v889, %v1034
      %v1091 = vadd.f32 %v954, %v1034
      %v1092 = vadd.f32 %v892, %v1039
      %v1093 = vadd.f32 %v957, %v1039
      %v1094 = vadd.f32 %v895, %v1044
      %v1095 = vadd.f32 %v960, %v1044
      %v1096 = vadd.f32 %v898, %v1049
      %v1097 = vadd.f32 %v963, %v1049
      %v1098 = vadd.f32 %v901, %v1054
      %v1099 = vadd.f32 %v966, %v1054
      %v1100 = vadd.f32 %v904, %v1059
      %v1101 = vadd.f32 %v969, %v1059
      %v1102 = vadd.f32 %v907, %v1064
      %v1103 = vadd.f32 %v972, %v1064
      %v1104 = vadd.f32 %v910, %v1069
      %v1105 = vadd.f32 %v975, %v1069
      %v1106 = vadd.f32 %v913, %v1074
      %v1107 = vadd.f32 %v978, %v1074
      %v1108 = vmul.f32 %v1076, 0.5
      %v1109 = vmul.f32 %v1077, 0.5
      %v1110 = vmul.f32 %v1078, 0.5
      %v1111 = vmul.f32 %v1079, 0.5
      %v1112 = vmul.f32 %v1080, 0.5
      %v1113 = vmul.f32 %v1081, 0.5
      %v1114 = vmul.f32 %v1082, 0.5
      %v1115 = vmul.f32 %v1083, 0.5
      %v1116 = vtanh.pop %v1108
      %v1117 = vtanh.pop %v1109
      %v1118 = vtanh.pop %v1110
      %v1119 = vtanh.pop %v1111
      %v1120 = vtanh.pop %v1112
      %v1121 = vtanh.pop %v1113
      %v1122 = vtanh.pop %v1114
      %v1123 = vtanh.pop %v1115
      %v1124 = vmul.f32 %v1116, 0.5
      %v1125 = vmul.f32 %v1117, 0.5
      %v1126 = vmul.f32 %v1118, 0.5
      %v1127 = vmul.f32 %v1119, 0.5
      %v1128 = vmul.f32 %v1120, 0.5
      %v1129 = vmul.f32 %v1121, 0.5
      %v1130 = vmul.f32 %v1122, 0.5
      %v1131 = vmul.f32 %v1123, 0.5
      %v1132 = vadd.f32 %v1124, 0.5
      %v1133 = vadd.f32 %v1125, 0.5
      %v1134 = vadd.f32 %v1126, 0.5
      %v1135 = vadd.f32 %v1127, 0.5
      %v1136 = vadd.f32 %v1128, 0.5
      %v1137 = vadd.f32 %v1129, 0.5
      %v1138 = vadd.f32 %v1130, 0.5
      %v1139 = vadd.f32 %v1131, 0.5
      %v1140 = vmul.f32 %v1084, 0.5
      %v1141 = vmul.f32 %v1085, 0.5
      %v1142 = vmul.f32 %v1086, 0.5
      %v1143 = vmul.f32 %v1087, 0.5
      %v1144 = vmul.f32 %v1088, 0.5
      %v1145 = vmul.f32 %v1089, 0.5
      %v1146 = vmul.f32 %v1090, 0.5
      %v1147 = vmul.f32 %v1091, 0.5
      %v1148 = vtanh.pop %v1140
      %v1149 = vtanh.pop %v1141
      %v1150 = vtanh.pop %v1142
      %v1151 = vtanh.pop %v1143
      %v1152 = vtanh.pop %v1144
      %v1153 = vtanh.pop %v1145
      %v1154 = vtanh.pop %v1146
      %v1155 = vtanh.pop %v1147
      %v1156 = vmul.f32 %v1148, 0.5
      %v1157 = vmul.f32 %v1149, 0.5
      %v1158 = vmul.f32 %v1150, 0.5
      %v1159 = vmul.f32 %v1151, 0.5
      %v1160 = vmul.f32 %v1152, 0.5
      %v1161 = vmul.f32 %v1153, 0.5
      %v1162 = vmul.f32 %v1154, 0.5
      %v1163 = vmul.f32 %v1155, 0.5
      %v1164 = vadd.f32 %v1156, 0.5
      %v1165 = vadd.f32 %v1157, 0.5
      %v1166 = vadd.f32 %v1158, 0.5
      %v1167 = vadd.f32 %v1159, 0.5
      %v1168 = vadd.f32 %v1160, 0.5
      %v1169 = vadd.f32 %v1161, 0.5
      %v1170 = vadd.f32 %v1162, 0.5
      %v1171 = vadd.f32 %v1163, 0.5
      %v1172 = vtanh.pop %v1092
      %v1173 = vtanh.pop %v1093
      %v1174 = vtanh.pop %v1094
      %v1175 = vtanh.pop %v1095
      %v1176 = vtanh.pop %v1096
      %v1177 = vtanh.pop %v1097
      %v1178 = vtanh.pop %v1098
      %v1179 = vtanh.pop %v1099
      %v1180 = vmul.f32 %v1100, 0.5
      %v1181 = vmul.f32 %v1101, 0.5
      %v1182 = vmul.f32 %v1102, 0.5
      %v1183 = vmul.f32 %v1103, 0.5
      %v1184 = vmul.f32 %v1104, 0.5
      %v1185 = vmul.f32 %v1105, 0.5
      %v1186 = vmul.f32 %v1106, 0.5
      %v1187 = vmul.f32 %v1107, 0.5
      %v1188 = vtanh.pop %v1180
      %v1189 = vtanh.pop %v1181
      %v1190 = vtanh.pop %v1182
      %v1191 = vtanh.pop %v1183
      %v1192 = vtanh.pop %v1184
      %v1193 = vtanh.pop %v1185
      %v1194 = vtanh.pop %v1186
      %v1195 = vtanh.pop %v1187
      %v1196 = vmul.f32 %v1188, 0.5
      %v1197 = vmul.f32 %v1189, 0.5
      %v1198 = vmul.f32 %v1190, 0.5
      %v1199 = vmul.f32 %v1191, 0.5
      %v1200 = vmul.f32 %v1192, 0.5
      %v1201 = vmul.f32 %v1193, 0.5
      %v1202 = vmul.f32 %v1194, 0.5
      %v1203 = vmul.f32 %v1195, 0.5
      %v1204 = vadd.f32 %v1196, 0.5
      %v1205 = vadd.f32 %v1197, 0.5
      %v1206 = vadd.f32 %v1198, 0.5
      %v1207 = vadd.f32 %v1199, 0.5
      %v1208 = vadd.f32 %v1200, 0.5
      %v1209 = vadd.f32 %v1201, 0.5
      %v1210 = vadd.f32 %v1202, 0.5
      %v1211 = vadd.f32 %v1203, 0.5
      %v1212 = vld [vmem:[%s376] sm:$0xff]
      %v1213 = vld [vmem:[%s376 + $0x8] sm:$0xff]
      %v1214 = vld [vmem:[%s376 + $0x10] sm:$0xff]
      %v1215 = vld [vmem:[%s376 + $0x18] sm:$0xff]
      %v1216 = vld [vmem:[%s376 + $0x20] sm:$0xff]
      %v1217 = vld [vmem:[%s376 + $0x28] sm:$0xff]
      %v1218 = vld [vmem:[%s376 + $0x30] sm:$0xff]
      %v1219 = vld [vmem:[%s376 + $0x38] sm:$0xff]
      %v1220 = vmul.f32 %v1164, %v1212
      %v1221 = vmul.f32 %v1165, %v1213
      %v1222 = vmul.f32 %v1166, %v1214
      %v1223 = vmul.f32 %v1167, %v1215
      %v1224 = vmul.f32 %v1168, %v1216
      %v1225 = vmul.f32 %v1169, %v1217
      %v1226 = vmul.f32 %v1170, %v1218
      %v1227 = vmul.f32 %v1171, %v1219
      %v1228 = vmul.f32 %v1132, %v1172
      %v1229 = vmul.f32 %v1133, %v1173
      %v1230 = vmul.f32 %v1134, %v1174
      %v1231 = vmul.f32 %v1135, %v1175
      %v1232 = vmul.f32 %v1136, %v1176
      %v1233 = vmul.f32 %v1137, %v1177
      %v1234 = vmul.f32 %v1138, %v1178
      %v1235 = vmul.f32 %v1139, %v1179
      %v1236 = vadd.f32 %v1220, %v1228
      %v1237 = vadd.f32 %v1221, %v1229
      %v1238 = vadd.f32 %v1222, %v1230
      %v1239 = vadd.f32 %v1223, %v1231
      %v1240 = vadd.f32 %v1224, %v1232
      %v1241 = vadd.f32 %v1225, %v1233
      %v1242 = vadd.f32 %v1226, %v1234
      %v1243 = vadd.f32 %v1227, %v1235
      %v1244 = vtanh.pop %v1236
      %v1245 = vtanh.pop %v1237
      %v1246 = vtanh.pop %v1238
      %v1247 = vtanh.pop %v1239
      %v1248 = vtanh.pop %v1240
      %v1249 = vtanh.pop %v1241
      %v1250 = vtanh.pop %v1242
      %v1251 = vtanh.pop %v1243
      %v1252 = vmul.f32 %v1204, %v1244
      %v1253 = vmul.f32 %v1205, %v1245
      %v1254 = vmul.f32 %v1206, %v1246
      %v1255 = vmul.f32 %v1207, %v1247
      %v1256 = vmul.f32 %v1208, %v1248
      %v1257 = vmul.f32 %v1209, %v1249
      %v1258 = vmul.f32 %v1210, %v1250
      %v1259 = vmul.f32 %v1211, %v1251
      %1260 = vst [vmem:[%s396] sm:$0xff] %v1236
      %1261 = vst [vmem:[%s396 + $0x8] sm:$0xff] %v1237
      %1262 = vst [vmem:[%s396 + $0x10] sm:$0xff] %v1238
      %1263 = vst [vmem:[%s396 + $0x18] sm:$0xff] %v1239
      %1264 = vst [vmem:[%s396 + $0x20] sm:$0xff] %v1240
      %1265 = vst [vmem:[%s396 + $0x28] sm:$0xff] %v1241
      %1266 = vst [vmem:[%s396 + $0x30] sm:$0xff] %v1242
      %1267 = vst [vmem:[%s396 + $0x38] sm:$0xff] %v1243
      %1268 = vst [vmem:[%s386] sm:$0xff] %v1252
      %1269 = vst [vmem:[%s386 + $0x8] sm:$0xff] %v1253
      %1270 = vst [vmem:[%s386 + $0x10] sm:$0xff] %v1254
      %1271 = vst [vmem:[%s386 + $0x18] sm:$0xff] %v1255
      %1272 = vst [vmem:[%s386 + $0x20] sm:$0xff] %v1256
      %1273 = vst [vmem:[%s386 + $0x28] sm:$0xff] %v1257
      %1274 = vst [vmem:[%s386 + $0x30] sm:$0xff] %v1258
      %1275 = vst [vmem:[%s386 + $0x38] sm:$0xff] %v1259
      %s1276 = smul.u32 2, %s24
      %p1277 = scmp.lt.s32.totalorder %s23, 1
      %s1278 = scalar_select %p1277, %s23, 1
      %p1279 = scmp.lt.s32.totalorder %s1276, 1
      %s1280 = scalar_select %p1279, %s1276, 1
      %s1281 = smul.addr %s1278, 8
      %s1282 = sadd.s32 %s1280, %s1281
      %s1283 = smul.addr %s1282, 8
      %s1284 = scalar_lea.vmem %s6, %s1283
      %s1285 = smul.u32 2, %s24
      %p1286 = scmp.lt.s32.totalorder %s23, 1
      %s1287 = scalar_select %p1286, %s23, 1
      %p1288 = scmp.lt.s32.totalorder %s1285, 1
      %s1289 = scalar_select %p1288, %s1285, 1
      %s1290 = smul.addr %s1287, 8
      %s1291 = sadd.s32 %s1289, %s1290
      %s1292 = smul.addr %s1291, 8
      %s1293 = scalar_lea.vmem %s7, %s1292
      // Predicated region
      $region45: #{conv_lstm_cell.1} parent=43 // pred_check
        %p1294 = pneg %p196
      $region46: #{conv_lstm_cell.1} parent=43 // pred_check_branch
        %1296 = sbr.rel (%p1294) target = $region48
      $region47: #{conv_lstm_cell.1} parent=43 // pred_region
        %s1297 = smul.u32 2, %s24
      $region48: #{conv_lstm_cell.1} parent=43 // pred_fallthru
        _
      // Predicated region
      $region49: #{conv_lstm_cell.1} parent=43 // pred_check
        %p1298 = pneg %p224
      $region50: #{conv_lstm_cell.1} parent=43 // pred_check_branch
        %1300 = sbr.rel (%p1298) target = $region52
      $region51: #{conv_lstm_cell.1} parent=43 // pred_region
        %s1301 = smul.u32 2, %s24
      $region52: #{conv_lstm_cell.1} parent=43 // pred_fallthru
        _
    $region44: #{conv_lstm_cell.1} parent=5 // pred_fallthru
      _
    %p1302 = scmp.le.s32.totalorder 2, %s14
    // Predicated region
    $region53: #{conv_lstm_cell.1} parent=5 // pred_check
      %p1303 = pneg %p1302
    $region54: #{conv_lstm_cell.1} parent=5 // pred_check_branch
      %1305 = sbr.rel (%p1303) target = $region56
    $region55: #{conv_lstm_cell.1} parent=5 // pred_region
      %s1306 = ssub.s32 %s14, 2
      // Predicated region
      $region57: #{conv_lstm_cell.1} parent=55 // pred_check
        %p1307 = pneg %p202
      $region58: #{conv_lstm_cell.1} parent=55 // pred_check_branch
        %1309 = sbr.rel (%p1307) target = $region60
      $region59: #{conv_lstm_cell.1} parent=55 // pred_region
        %s1310 = smul.u32 2, %s26
        %p1311 = scmp.lt.s32.totalorder %s25, 1
        %s1312 = scalar_select %p1311, %s25, 1
        %p1313 = scmp.lt.s32.totalorder %s1310, 1
        %s1314 = scalar_select %p1313, %s1310, 1
        %s1315 = smul.addr %s1312, 8
        %s1316 = sadd.s32 %s1314, %s1315
        %s1317 = smul.addr %s1316, 8
        %s1318 = scalar_lea.vmem %s6, %s1317
      $region60: #{conv_lstm_cell.1} parent=55 // pred_fallthru
        _
      // Predicated region
      $region61: #{conv_lstm_cell.1} parent=55 // pred_check
        %p1319 = pneg %p230
      $region62: #{conv_lstm_cell.1} parent=55 // pred_check_branch
        %1321 = sbr.rel (%p1319) target = $region64
      $region63: #{conv_lstm_cell.1} parent=55 // pred_region
        %s1322 = smul.u32 2, %s26
        %p1323 = scmp.lt.s32.totalorder %s25, 1
        %s1324 = scalar_select %p1323, %s25, 1
        %p1325 = scmp.lt.s32.totalorder %s1322, 1
        %s1326 = scalar_select %p1325, %s1322, 1
        %s1327 = smul.addr %s1324, 8
        %s1328 = sadd.s32 %s1326, %s1327
        %s1329 = smul.addr %s1328, 8
        %s1330 = scalar_lea.vmem %s7, %s1329
      $region64: #{conv_lstm_cell.1} parent=55 // pred_fallthru
        _
    $region56: #{conv_lstm_cell.1} parent=5 // pred_fallthru
      _
  $region6: #{conv_lstm_cell.1} parent=0 // loop_footer
    %s18 = sadd.s32 1, %s14
  $region7: #{conv_lstm_cell.1} parent=0 // loop_footer_branch
    %13 = sbr.rel target = $region3
  $region8: #{conv_lstm_cell.1} parent=0 // loop_exit
    _

</llo_original>
